<compile_context>
chip_gen: v6e
topology: v6e:2x2x1
jax: 0.10.0
libtpu: 0.0.40
codegen_flags: <defaults>
</compile_context>

<pallas_src>
import functools

import jax
import jax.numpy as jnp
from jax.experimental import pallas as pl
from jax.experimental.pallas import tpu as pltpu


# ---------------------------------------------------------------------------
# Kernel: one time-chunk (Tc steps) through the full LSTM stack
# ---------------------------------------------------------------------------
def encoder_kernel(x_ref, *refs, n_layers, chunk_steps, batch, hid_dim):
    """Fused stacked-LSTM chunk.

    x_ref  : VMEM [Tc*Bp, E] bf16  -- embedded inputs for this chunk,
             time-major rows (row = t*Bp + b).
    per layer l: wih_l [D_in, 4H] bf16, whh_l [H, 4H] f32, b_l [1, 4H] f32.
    outputs: out [T*Bp, H] f32 (chunked block [Tc*Bp, H]),
             h_out [L, Bp, H] f32, c_out [L, Bp, H] f32 (VMEM-resident across
             chunks; they double as the recurrent h/c state).
    scratch: xbuf [Tc*Bp, H] bf16 (inter-layer activations),
             gates [Tc*Bp, 4H] f32 (hoisted input projection).
    Gate order (PyTorch): i, f, g, o.
    """
    Tc, Bp, H = chunk_steps, batch, hid_dim
    nw = 3 * n_layers
    w_refs = refs[:nw]
    out_ref, h_out_ref, c_out_ref = refs[nw:nw + 3]
    xbuf_ref, gates_ref = refs[nw + 3:]

    # h/c = 0 at t = 0 (PyTorch default initial state).
    @pl.when(pl.program_id(0) == 0)
    def _():
        h_out_ref[...] = jnp.zeros_like(h_out_ref)
        c_out_ref[...] = jnp.zeros_like(c_out_ref)

    for l in range(n_layers):
        wih_ref = w_refs[3 * l]          # [D_in, 4H] bf16
        whh_ref = w_refs[3 * l + 1]      # [H, 4H]    f32
        b_ref = w_refs[3 * l + 2]        # [1, 4H]    f32
        last = l == n_layers - 1

        x_seq = x_ref[...] if l == 0 else xbuf_ref[...]         # bf16 [Tc*Bp, D_in]

        # Hoisted input projection for the whole chunk (bias folded in here,
        # outside the recurrence): ONE big MXU matmul, bf16 operands, f32 acc.
        gates_ref[...] = jnp.dot(
            x_seq, wih_ref[...],
            preferred_element_type=jnp.float32) + b_ref[...]

        whh = whh_ref[...]               # f32, loaded once per layer
        carry0 = (h_out_ref[l], c_out_ref[l])

        def step(t, carry, whh=whh, last=last):
            h, c = carry                                         # f32 [Bp, H]
            row = pl.multiple_of(t * Bp, Bp)
            g = gates_ref[pl.ds(row, Bp), :] + jnp.dot(
                h, whh, preferred_element_type=jnp.float32)      # [Bp, 4H] f32
            if H % 128 == 0:
                # Lane-aligned per-gate slices: 4H lanes of EUP work per step.
                if_g = jax.nn.sigmoid(g[:, 0:2 * H])
                i_g = if_g[:, 0:H]
                f_g = if_g[:, H:2 * H]
                g_g = jnp.tanh(g[:, 2 * H:3 * H])
                o_g = jax.nn.sigmoid(g[:, 3 * H:4 * H])
            else:
                # Sub-vreg gate width: full-vreg EUP passes, then static slices.
                sig = jax.nn.sigmoid(g)
                tah = jnp.tanh(g)
                i_g = sig[:, 0:H]
                f_g = sig[:, H:2 * H]
                g_g = tah[:, 2 * H:3 * H]
                o_g = sig[:, 3 * H:4 * H]
            c_new = f_g * c + i_g * g_g
            h_new = o_g * jnp.tanh(c_new)
            if last:
                out_ref[pl.ds(row, Bp), :] = h_new               # lane-dense f32
            else:
                xbuf_ref[pl.ds(row, Bp), :] = h_new.astype(xbuf_ref.dtype)
            return (h_new, c_new)

        h_fin, c_fin = jax.lax.fori_loop(0, Tc, step, carry0,
                                         unroll=min(4, Tc))
        h_out_ref[l] = h_fin
        c_out_ref[l] = c_fin


# ---------------------------------------------------------------------------
# Wrapper
# ---------------------------------------------------------------------------
def _choose_chunk(T, Bp, E, H, budget_bytes):
    """Largest divisor of T whose chunk VMEM footprint fits budget_bytes."""
    per_step = Bp * (2 * E * 2        # x0 block bf16, double-buffered
                     + 2 * H * 4      # out block f32, double-buffered
                     + H * 2          # xbuf bf16
                     + 4 * H * 4)     # gates f32
    max_tc = max(1, budget_bytes // max(per_step, 1))
    tc = 1
    for d in range(1, T + 1):
        if T % d == 0 and d <= max_tc:
            tc = d
    return tc


def encoder_forward(src, params, *, max_chunk_steps=None):
    """Equivalent of Encoder.forward(src) in eval mode.

    src: [B, T] int token ids.  Returns (outputs [B,T,H], hidden [L,B,H],
    cell [L,B,H]) with PyTorch nn.LSTM(batch_first=True) conventions.
    """
    emb = params["embedding"]                    # [V, E] f32, row 0 zeroed
    V, E = emb.shape
    H = params["whh"][0].shape[0]
    L = len(params["wih"])
    B, T = src.shape

    # Pad batch to a sublane multiple; padded rows use token 0 (padding_idx).
    Bp = max(8, ((B + 7) // 8) * 8)
    src_p = jnp.zeros((Bp, T), jnp.int32).at[:B, :].set(src.astype(jnp.int32))
    # nn.Embedding raises on out-of-vocab ids; clamp so the gather stays in
    # bounds (documented deviation).
    src_p = jnp.clip(src_p, 0, V - 1)
    ids_tm = jnp.transpose(src_p).reshape(T * Bp)    # time-major: row = t*Bp + b

    # Embedding lookup in the wrapper (batched XLA gather, HBM-BW-bound) and
    # fed to the kernel as a pipelined bf16 BlockSpec input.
    x0 = jnp.take(emb, ids_tm, axis=0).astype(jnp.bfloat16)     # [T*Bp, E]

    Tc = _choose_chunk(T, Bp, E, H, budget_bytes=8 << 20)
    if max_chunk_steps is not None and Tc > max_chunk_steps:
        Tc = max(d for d in range(1, max_chunk_steps + 1) if T % d == 0)
    n_chunks = T // Tc
    blk = Tc * Bp

    # Size scoped VMEM from the actual footprint (default 16/32 MiB is easily
    # exceeded at realistic T*B without this).
    vmem_bytes = 2 * blk * E * 2 + 2 * blk * H * 4          # pipelined blocks
    vmem_bytes += 2 * 2 * L * Bp * H * 4                    # resident h/c outs
    for l in range(L):
        d_in = E if l == 0 else H
        vmem_bytes += 2 * (d_in * 4 * H * 2 + H * 4 * H * 4 + 4 * H * 4)
    vmem_bytes += blk * H * 2 + blk * 4 * H * 4             # xbuf + gates
    vmem_bytes = max(int(vmem_bytes * 1.5) + (2 << 20), 4 << 20)
    vmem_bytes = min(vmem_bytes, 64 << 20)                   # v7x-safe ceiling

    kernel = functools.partial(encoder_kernel, n_layers=L, chunk_steps=Tc,
                               batch=Bp, hid_dim=H)

    in_specs = [pl.BlockSpec((blk, E), lambda c: (c, 0))]
    weight_args = []
    for l in range(L):
        d_in = E if l == 0 else H
        weight_args += [params["wih"][l], params["whh"][l], params["bias"][l]]
        in_specs += [
            pl.BlockSpec((d_in, 4 * H), lambda c: (0, 0)),
            pl.BlockSpec((H, 4 * H), lambda c: (0, 0)),
            pl.BlockSpec((1, 4 * H), lambda c: (0, 0)),
        ]

    out_specs = (
        pl.BlockSpec((blk, H), lambda c: (c, 0)),            # lane-dense stream
        pl.BlockSpec((L, Bp, H), lambda c: (0, 0, 0)),        # resident h state
        pl.BlockSpec((L, Bp, H), lambda c: (0, 0, 0)),        # resident c state
    )

    out_tm, hid, cell = pl.pallas_call(
        kernel,
        out_shape=(
            jax.ShapeDtypeStruct((T * Bp, H), jnp.float32),
            jax.ShapeDtypeStruct((L, Bp, H), jnp.float32),
            jax.ShapeDtypeStruct((L, Bp, H), jnp.float32),
        ),
        grid_spec=pltpu.PrefetchScalarGridSpec(
            num_scalar_prefetch=0,
            grid=(n_chunks,),
            in_specs=in_specs,
            out_specs=out_specs,
            scratch_shapes=[
                pltpu.VMEM((blk, H), jnp.bfloat16),           # inter-layer acts
                pltpu.VMEM((blk, 4 * H), jnp.float32),        # hoisted gates
            ],
        ),
        compiler_params=pltpu.CompilerParams(
            dimension_semantics=("arbitrary",),               # time is sequential
            vmem_limit_bytes=vmem_bytes,
        ),
    )(x0, *weight_args)

    # Cheap XLA reorder in the wrapper (kernel stores stay lane-dense).
    outputs = out_tm.reshape(T, Bp, H).transpose(1, 0, 2)[:B]
    return outputs, hid[:, :B], cell[:, :B]


# ---------------------------------------------------------------------------
# Deterministic parameter init (PyTorch-style, pre-transposed for TPU)
# ---------------------------------------------------------------------------
def init_params(key, input_dim, emb_dim, hid_dim, n_layers):
    # NOTE: for real model sizes, pick emb_dim / hid_dim as multiples of 128 so
    # gate slices, carries, and stores are lane-dense.
    keys = jax.random.split(key, 1 + 4 * n_layers)
    emb = jax.random.normal(keys[0], (input_dim, emb_dim), jnp.float32)
    emb = emb.at[0].set(0.0)                     # padding_idx=0

    k = 1.0 / jnp.sqrt(jnp.float32(hid_dim))
    wih, whh, bias = [], [], []
    for l in range(n_layers):
        in_dim = emb_dim if l == 0 else hid_dim
        kw = keys[1 + 4 * l: 1 + 4 * (l + 1)]
        w_ih = jax.random.uniform(kw[0], (4 * hid_dim, in_dim), jnp.float32, -k, k)
        w_hh = jax.random.uniform(kw[1], (4 * hid_dim, hid_dim), jnp.float32, -k, k)
        b_ih = jax.random.uniform(kw[2], (4 * hid_dim,), jnp.float32, -k, k)
        b_hh = jax.random.uniform(kw[3], (4 * hid_dim,), jnp.float32, -k, k)
        # Input projection: bf16 MXU operand, pre-transposed [D_in, 4H].
        wih.append(w_ih.T.astype(jnp.bfloat16))
        # Recurrent weight stays f32 so the h @ Whh chain does not compound
        # bf16 rounding over T steps (matches PyTorch f32 LSTM more closely).
        whh.append(w_hh.T.astype(jnp.float32))
        bias.append((b_ih + b_hh).reshape(1, -1).astype(jnp.float32))

    return {"embedding": emb, "wih": wih, "whh": whh, "bias": bias}


# ---------------------------------------------------------------------------
if __name__ == "__main__":
    INPUT_DIM = 50     # vocab size
    EMB_DIM = 32
    HID_DIM = 32
    N_LAYERS = 2
    B, T = 2, 8

    key = jax.random.PRNGKey(0)
    pkey, dkey = jax.random.split(key)
    params = init_params(pkey, INPUT_DIM, EMB_DIM, HID_DIM, N_LAYERS)
    src = jax.random.randint(dkey, (B, T), 0, INPUT_DIM, dtype=jnp.int32)

    # max_chunk_steps=4 -> grid of 2 chunks, exercising the h/c carry path.
    fwd = jax.jit(functools.partial(encoder_forward, max_chunk_steps=4))
    outputs, hidden, cell = fwd(src, params)
    jax.block_until_ready((outputs, hidden, cell))

    assert outputs.shape == (B, T, HID_DIM)
    assert hidden.shape == (N_LAYERS, B, HID_DIM)
    assert cell.shape == (N_LAYERS, B, HID_DIM)
    assert bool(jnp.all(jnp.isfinite(outputs)))
    assert bool(jnp.all(jnp.isfinite(hidden)))
    assert bool(jnp.all(jnp.isfinite(cell)))
    # Last time step of the top layer must equal the returned hidden state.
    assert bool(jnp.allclose(outputs[:, -1, :], hidden[-1], atol=1e-5))
    print("KERNEL_OK")
</pallas_src>

<mosaic_0001>
module attributes {stable_mosaic.version = 11 : i64} {
  func.func @encoder_kernel(%arg0: i32, %arg1: memref<32x32xbf16, #tpu.memory_space<vmem>>, %arg2: memref<32x128xbf16, #tpu.memory_space<vmem>>, %arg3: memref<32x128xf32, #tpu.memory_space<vmem>>, %arg4: memref<1x128xf32, #tpu.memory_space<vmem>>, %arg5: memref<32x128xbf16, #tpu.memory_space<vmem>>, %arg6: memref<32x128xf32, #tpu.memory_space<vmem>>, %arg7: memref<1x128xf32, #tpu.memory_space<vmem>>, %arg8: memref<32x32xf32, #tpu.memory_space<vmem>>, %arg9: memref<2x8x32xf32, #tpu.memory_space<vmem>>, %arg10: memref<2x8x32xf32, #tpu.memory_space<vmem>>, %arg11: memref<32x32xbf16, #tpu.memory_space<vmem>>, %arg12: memref<32x128xf32, #tpu.memory_space<vmem>>) attributes {dimension_semantics = [#tpu.dimension_semantics<arbitrary>], iteration_bounds = array<i64: 2>, scalar_prefetch = 0 : i64, scratch_operands = 2 : i64, tpu.core_type = #tpu.core_type<tc>, window_params = [{transform_indices = @transform_0, window_bounds = array<i64: 32, 32>}, {pipeline_mode = #tpu.pipeline_mode<synchronous>, transform_indices = @transform_1, window_bounds = array<i64: 32, 128>}, {pipeline_mode = #tpu.pipeline_mode<synchronous>, transform_indices = @transform_2, window_bounds = array<i64: 32, 128>}, {pipeline_mode = #tpu.pipeline_mode<synchronous>, transform_indices = @transform_3, window_bounds = array<i64: 1, 128>}, {pipeline_mode = #tpu.pipeline_mode<synchronous>, transform_indices = @transform_4, window_bounds = array<i64: 32, 128>}, {pipeline_mode = #tpu.pipeline_mode<synchronous>, transform_indices = @transform_5, window_bounds = array<i64: 32, 128>}, {pipeline_mode = #tpu.pipeline_mode<synchronous>, transform_indices = @transform_6, window_bounds = array<i64: 1, 128>}, {transform_indices = @transform_7, window_bounds = array<i64: 32, 32>}, {pipeline_mode = #tpu.pipeline_mode<synchronous>, transform_indices = @transform_8, window_bounds = array<i64: 2, 8, 32>}, {pipeline_mode = #tpu.pipeline_mode<synchronous>, transform_indices = @transform_9, window_bounds = array<i64: 2, 8, 32>}]} {
    %c0_i32 = arith.constant 0 : i32
    %0 = arith.cmpi eq, %arg0, %c0_i32 : i32
    %1 = arith.extui %0 : i1 to i32
    %c0_i32_0 = arith.constant 0 : i32
    %2 = arith.cmpi ne, %1, %c0_i32_0 : i32
    scf.if %2 {
      %cst_89 = arith.constant 0.000000e+00 : f32
      %227 = vector.broadcast %cst_89 : f32 to vector<2x8x32xf32>
      %c0_90 = arith.constant 0 : index
      %c0_91 = arith.constant 0 : index
      %c0_92 = arith.constant 0 : index
      %228 = vector.load %arg9[%c0_90, %c0_91, %c0_92] : memref<2x8x32xf32, #tpu.memory_space<vmem>>, vector<2x8x32xf32>
      tpu.vector_store %arg9[%c0_90, %c0_91, %c0_92], %227 {strides = array<i32>} : memref<2x8x32xf32, #tpu.memory_space<vmem>>, vector<2x8x32xf32>,
      %cst_93 = arith.constant 0.000000e+00 : f32
      %229 = vector.broadcast %cst_93 : f32 to vector<2x8x32xf32>
      %c0_94 = arith.constant 0 : index
      %c0_95 = arith.constant 0 : index
      %c0_96 = arith.constant 0 : index
      %230 = vector.load %arg10[%c0_94, %c0_95, %c0_96] : memref<2x8x32xf32, #tpu.memory_space<vmem>>, vector<2x8x32xf32>
      tpu.vector_store %arg10[%c0_94, %c0_95, %c0_96], %229 {strides = array<i32>} : memref<2x8x32xf32, #tpu.memory_space<vmem>>, vector<2x8x32xf32>,
    } else {
    }
    %c0 = arith.constant 0 : index
    %c0_1 = arith.constant 0 : index
    %3 = vector.load %arg1[%c0, %c0_1] : memref<32x32xbf16, #tpu.memory_space<vmem>>, vector<32x32xbf16>
    %c0_2 = arith.constant 0 : index
    %c0_3 = arith.constant 0 : index
    %4 = vector.load %arg2[%c0_2, %c0_3] : memref<32x128xbf16, #tpu.memory_space<vmem>>, vector<32x128xbf16>
    %cst = arith.constant dense<0.000000e+00> : vector<32x128xf32>
    %5 = tpu.matmul %3, %4, %cst {dimension_numbers = #tpu.dot_dimension_numbers<[1], [0], [0], [1], [0, 0, 1, 1], [], []>} : vector<32x32xbf16>, vector<32x128xbf16>, vector<32x128xf32> -> vector<32x128xf32>
    %c0_4 = arith.constant 0 : index
    %c0_5 = arith.constant 0 : index
    %6 = vector.load %arg4[%c0_4, %c0_5] : memref<1x128xf32, #tpu.memory_space<vmem>>, vector<1x128xf32>
    %7 = vector.broadcast %6 : vector<1x128xf32> to vector<32x128xf32>
    %8 = arith.addf %5, %7 : vector<32x128xf32>
    %c0_6 = arith.constant 0 : index
    %c0_7 = arith.constant 0 : index
    %9 = vector.load %arg12[%c0_6, %c0_7] : memref<32x128xf32, #tpu.memory_space<vmem>>, vector<32x128xf32>
    tpu.vector_store %arg12[%c0_6, %c0_7], %8 {strides = array<i32>} : memref<32x128xf32, #tpu.memory_space<vmem>>, vector<32x128xf32>,
    %c0_8 = arith.constant 0 : index
    %c0_9 = arith.constant 0 : index
    %10 = vector.load %arg3[%c0_8, %c0_9] : memref<32x128xf32, #tpu.memory_space<vmem>>, vector<32x128xf32>
    %c0_10 = arith.constant 0 : index
    %c0_11 = arith.constant 0 : index
    %c0_12 = arith.constant 0 : index
    %11 = vector.load %arg9[%c0_10, %c0_11, %c0_12] : memref<2x8x32xf32, #tpu.memory_space<vmem>>, vector<1x8x32xf32>
    %12 = vector.shape_cast %11 : vector<1x8x32xf32> to vector<8x32xf32>
    %c0_13 = arith.constant 0 : index
    %c0_14 = arith.constant 0 : index
    %c0_15 = arith.constant 0 : index
    %13 = vector.load %arg10[%c0_13, %c0_14, %c0_15] : memref<2x8x32xf32, #tpu.memory_space<vmem>>, vector<1x8x32xf32>
    %14 = vector.shape_cast %13 : vector<1x8x32xf32> to vector<8x32xf32>
    %c0_i32_16 = arith.constant 0 : i32
    %c8_i32 = arith.constant 8 : i32
    %15 = arith.muli %c0_i32_16, %c8_i32 : i32
    %16 = tpu.assume_multiple %15, 8 : i32
    %17 = arith.index_cast %16 : i32 to index
    %c0_17 = arith.constant 0 : index
    %18 = vector.load %arg12[%17, %c0_17] : memref<32x128xf32, #tpu.memory_space<vmem>>, vector<8x128xf32>
    %cst_18 = arith.constant dense<0.000000e+00> : vector<8x128xf32>
    %19 = tpu.matmul %12, %10, %cst_18 {dimension_numbers = #tpu.dot_dimension_numbers<[1], [0], [0], [1], [0, 0, 1, 1], [], []>} : vector<8x32xf32>, vector<32x128xf32>, vector<8x128xf32> -> vector<8x128xf32>
    %20 = arith.addf %18, %19 : vector<8x128xf32>
    %21 = arith.negf %20 : vector<8x128xf32>
    %22 = math.exp %21 : vector<8x128xf32>
    %cst_19 = arith.constant 1.000000e+00 : f32
    %23 = vector.broadcast %cst_19 : f32 to vector<8x128xf32>
    %24 = arith.addf %23, %22 : vector<8x128xf32>
    %25 = arith.divf %23, %24 : vector<8x128xf32>
    %26 = math.tanh %20 : vector<8x128xf32>
    %27 = vector.extract_strided_slice %25 {offsets = [0, 0], sizes = [8, 32], strides = [1, 1]} : vector<8x128xf32> to vector<8x32xf32>
    %28 = vector.extract_strided_slice %25 {offsets = [0, 32], sizes = [8, 32], strides = [1, 1]} : vector<8x128xf32> to vector<8x32xf32>
    %29 = vector.extract_strided_slice %26 {offsets = [0, 64], sizes = [8, 32], strides = [1, 1]} : vector<8x128xf32> to vector<8x32xf32>
    %30 = vector.extract_strided_slice %25 {offsets = [0, 96], sizes = [8, 32], strides = [1, 1]} : vector<8x128xf32> to vector<8x32xf32>
    %31 = arith.mulf %28, %14 : vector<8x32xf32>
    %32 = arith.mulf %27, %29 : vector<8x32xf32>
    %33 = arith.addf %31, %32 : vector<8x32xf32>
    %34 = math.tanh %33 : vector<8x32xf32>
    %35 = arith.mulf %30, %34 : vector<8x32xf32>
    %36 = arith.truncf %35 : vector<8x32xf32> to vector<8x32xbf16>
    %37 = arith.index_cast %16 : i32 to index
    %c0_20 = arith.constant 0 : index
    %38 = vector.load %arg11[%37, %c0_20] : memref<32x32xbf16, #tpu.memory_space<vmem>>, vector<8x32xbf16>
    tpu.vector_store %arg11[%37, %c0_20], %36 {strides = array<i32>} : memref<32x32xbf16, #tpu.memory_space<vmem>>, vector<8x32xbf16>,
    %c1_i32 = arith.constant 1 : i32
    %c8_i32_21 = arith.constant 8 : i32
    %39 = arith.muli %c1_i32, %c8_i32_21 : i32
    %40 = tpu.assume_multiple %39, 8 : i32
    %41 = arith.index_cast %40 : i32 to index
    %c0_22 = arith.constant 0 : index
    %42 = vector.load %arg12[%41, %c0_22] : memref<32x128xf32, #tpu.memory_space<vmem>>, vector<8x128xf32>
    %cst_23 = arith.constant dense<0.000000e+00> : vector<8x128xf32>
    %43 = tpu.matmul %35, %10, %cst_23 {dimension_numbers = #tpu.dot_dimension_numbers<[1], [0], [0], [1], [0, 0, 1, 1], [], []>} : vector<8x32xf32>, vector<32x128xf32>, vector<8x128xf32> -> vector<8x128xf32>
    %44 = arith.addf %42, %43 : vector<8x128xf32>
    %45 = arith.negf %44 : vector<8x128xf32>
    %46 = math.exp %45 : vector<8x128xf32>
    %cst_24 = arith.constant 1.000000e+00 : f32
    %47 = vector.broadcast %cst_24 : f32 to vector<8x128xf32>
    %48 = arith.addf %47, %46 : vector<8x128xf32>
    %49 = arith.divf %47, %48 : vector<8x128xf32>
    %50 = math.tanh %44 : vector<8x128xf32>
    %51 = vector.extract_strided_slice %49 {offsets = [0, 0], sizes = [8, 32], strides = [1, 1]} : vector<8x128xf32> to vector<8x32xf32>
    %52 = vector.extract_strided_slice %49 {offsets = [0, 32], sizes = [8, 32], strides = [1, 1]} : vector<8x128xf32> to vector<8x32xf32>
    %53 = vector.extract_strided_slice %50 {offsets = [0, 64], sizes = [8, 32], strides = [1, 1]} : vector<8x128xf32> to vector<8x32xf32>
    %54 = vector.extract_strided_slice %49 {offsets = [0, 96], sizes = [8, 32], strides = [1, 1]} : vector<8x128xf32> to vector<8x32xf32>
    %55 = arith.mulf %52, %33 : vector<8x32xf32>
    %56 = arith.mulf %51, %53 : vector<8x32xf32>
    %57 = arith.addf %55, %56 : vector<8x32xf32>
    %58 = math.tanh %57 : vector<8x32xf32>
    %59 = arith.mulf %54, %58 : vector<8x32xf32>
    %60 = arith.truncf %59 : vector<8x32xf32> to vector<8x32xbf16>
    %61 = arith.index_cast %40 : i32 to index
    %c0_25 = arith.constant 0 : index
    %62 = vector.load %arg11[%61, %c0_25] : memref<32x32xbf16, #tpu.memory_space<vmem>>, vector<8x32xbf16>
    tpu.vector_store %arg11[%61, %c0_25], %60 {strides = array<i32>} : memref<32x32xbf16, #tpu.memory_space<vmem>>, vector<8x32xbf16>,
    %c2_i32 = arith.constant 2 : i32
    %c8_i32_26 = arith.constant 8 : i32
    %63 = arith.muli %c2_i32, %c8_i32_26 : i32
    %64 = tpu.assume_multiple %63, 8 : i32
    %65 = arith.index_cast %64 : i32 to index
    %c0_27 = arith.constant 0 : index
    %66 = vector.load %arg12[%65, %c0_27] : memref<32x128xf32, #tpu.memory_space<vmem>>, vector<8x128xf32>
    %cst_28 = arith.constant dense<0.000000e+00> : vector<8x128xf32>
    %67 = tpu.matmul %59, %10, %cst_28 {dimension_numbers = #tpu.dot_dimension_numbers<[1], [0], [0], [1], [0, 0, 1, 1], [], []>} : vector<8x32xf32>, vector<32x128xf32>, vector<8x128xf32> -> vector<8x128xf32>
    %68 = arith.addf %66, %67 : vector<8x128xf32>
    %69 = arith.negf %68 : vector<8x128xf32>
    %70 = math.exp %69 : vector<8x128xf32>
    %cst_29 = arith.constant 1.000000e+00 : f32
    %71 = vector.broadcast %cst_29 : f32 to vector<8x128xf32>
    %72 = arith.addf %71, %70 : vector<8x128xf32>
    %73 = arith.divf %71, %72 : vector<8x128xf32>
    %74 = math.tanh %68 : vector<8x128xf32>
    %75 = vector.extract_strided_slice %73 {offsets = [0, 0], sizes = [8, 32], strides = [1, 1]} : vector<8x128xf32> to vector<8x32xf32>
    %76 = vector.extract_strided_slice %73 {offsets = [0, 32], sizes = [8, 32], strides = [1, 1]} : vector<8x128xf32> to vector<8x32xf32>
    %77 = vector.extract_strided_slice %74 {offsets = [0, 64], sizes = [8, 32], strides = [1, 1]} : vector<8x128xf32> to vector<8x32xf32>
    %78 = vector.extract_strided_slice %73 {offsets = [0, 96], sizes = [8, 32], strides = [1, 1]} : vector<8x128xf32> to vector<8x32xf32>
    %79 = arith.mulf %76, %57 : vector<8x32xf32>
    %80 = arith.mulf %75, %77 : vector<8x32xf32>
    %81 = arith.addf %79, %80 : vector<8x32xf32>
    %82 = math.tanh %81 : vector<8x32xf32>
    %83 = arith.mulf %78, %82 : vector<8x32xf32>
    %84 = arith.truncf %83 : vector<8x32xf32> to vector<8x32xbf16>
    %85 = arith.index_cast %64 : i32 to index
    %c0_30 = arith.constant 0 : index
    %86 = vector.load %arg11[%85, %c0_30] : memref<32x32xbf16, #tpu.memory_space<vmem>>, vector<8x32xbf16>
    tpu.vector_store %arg11[%85, %c0_30], %84 {strides = array<i32>} : memref<32x32xbf16, #tpu.memory_space<vmem>>, vector<8x32xbf16>,
    %c3_i32 = arith.constant 3 : i32
    %c8_i32_31 = arith.constant 8 : i32
    %87 = arith.muli %c3_i32, %c8_i32_31 : i32
    %88 = tpu.assume_multiple %87, 8 : i32
    %89 = arith.index_cast %88 : i32 to index
    %c0_32 = arith.constant 0 : index
    %90 = vector.load %arg12[%89, %c0_32] : memref<32x128xf32, #tpu.memory_space<vmem>>, vector<8x128xf32>
    %cst_33 = arith.constant dense<0.000000e+00> : vector<8x128xf32>
    %91 = tpu.matmul %83, %10, %cst_33 {dimension_numbers = #tpu.dot_dimension_numbers<[1], [0], [0], [1], [0, 0, 1, 1], [], []>} : vector<8x32xf32>, vector<32x128xf32>, vector<8x128xf32> -> vector<8x128xf32>
    %92 = arith.addf %90, %91 : vector<8x128xf32>
    %93 = arith.negf %92 : vector<8x128xf32>
    %94 = math.exp %93 : vector<8x128xf32>
    %cst_34 = arith.constant 1.000000e+00 : f32
    %95 = vector.broadcast %cst_34 : f32 to vector<8x128xf32>
    %96 = arith.addf %95, %94 : vector<8x128xf32>
    %97 = arith.divf %95, %96 : vector<8x128xf32>
    %98 = math.tanh %92 : vector<8x128xf32>
    %99 = vector.extract_strided_slice %97 {offsets = [0, 0], sizes = [8, 32], strides = [1, 1]} : vector<8x128xf32> to vector<8x32xf32>
    %100 = vector.extract_strided_slice %97 {offsets = [0, 32], sizes = [8, 32], strides = [1, 1]} : vector<8x128xf32> to vector<8x32xf32>
    %101 = vector.extract_strided_slice %98 {offsets = [0, 64], sizes = [8, 32], strides = [1, 1]} : vector<8x128xf32> to vector<8x32xf32>
    %102 = vector.extract_strided_slice %97 {offsets = [0, 96], sizes = [8, 32], strides = [1, 1]} : vector<8x128xf32> to vector<8x32xf32>
    %103 = arith.mulf %100, %81 : vector<8x32xf32>
    %104 = arith.mulf %99, %101 : vector<8x32xf32>
    %105 = arith.addf %103, %104 : vector<8x32xf32>
    %106 = math.tanh %105 : vector<8x32xf32>
    %107 = arith.mulf %102, %106 : vector<8x32xf32>
    %108 = arith.truncf %107 : vector<8x32xf32> to vector<8x32xbf16>
    %109 = arith.index_cast %88 : i32 to index
    %c0_35 = arith.constant 0 : index
    %110 = vector.load %arg11[%109, %c0_35] : memref<32x32xbf16, #tpu.memory_space<vmem>>, vector<8x32xbf16>
    tpu.vector_store %arg11[%109, %c0_35], %108 {strides = array<i32>} : memref<32x32xbf16, #tpu.memory_space<vmem>>, vector<8x32xbf16>,
    %c4_i32 = arith.constant 4 : i32
    %c0_36 = arith.constant 0 : index
    %c0_37 = arith.constant 0 : index
    %c0_38 = arith.constant 0 : index
    %111 = vector.load %arg9[%c0_36, %c0_37, %c0_38] : memref<2x8x32xf32, #tpu.memory_space<vmem>>, vector<1x8x32xf32>
    %112 = vector.shape_cast %111 : vector<1x8x32xf32> to vector<8x32xf32>
    %113 = vector.shape_cast %107 : vector<8x32xf32> to vector<1x8x32xf32>
    tpu.vector_store %arg9[%c0_36, %c0_37, %c0_38], %113 {strides = array<i32>} : memref<2x8x32xf32, #tpu.memory_space<vmem>>, vector<1x8x32xf32>,
    %c0_39 = arith.constant 0 : index
    %c0_40 = arith.constant 0 : index
    %c0_41 = arith.constant 0 : index
    %114 = vector.load %arg10[%c0_39, %c0_40, %c0_41] : memref<2x8x32xf32, #tpu.memory_space<vmem>>, vector<1x8x32xf32>
    %115 = vector.shape_cast %114 : vector<1x8x32xf32> to vector<8x32xf32>
    %116 = vector.shape_cast %105 : vector<8x32xf32> to vector<1x8x32xf32>
    tpu.vector_store %arg10[%c0_39, %c0_40, %c0_41], %116 {strides = array<i32>} : memref<2x8x32xf32, #tpu.memory_space<vmem>>, vector<1x8x32xf32>,
    %c0_42 = arith.constant 0 : index
    %c0_43 = arith.constant 0 : index
    %117 = vector.load %arg11[%c0_42, %c0_43] : memref<32x32xbf16, #tpu.memory_space<vmem>>, vector<32x32xbf16>
    %c0_44 = arith.constant 0 : index
    %c0_45 = arith.constant 0 : index
    %118 = vector.load %arg5[%c0_44, %c0_45] : memref<32x128xbf16, #tpu.memory_space<vmem>>, vector<32x128xbf16>
    %cst_46 = arith.constant dense<0.000000e+00> : vector<32x128xf32>
    %119 = tpu.matmul %117, %118, %cst_46 {dimension_numbers = #tpu.dot_dimension_numbers<[1], [0], [0], [1], [0, 0, 1, 1], [], []>} : vector<32x32xbf16>, vector<32x128xbf16>, vector<32x128xf32> -> vector<32x128xf32>
    %c0_47 = arith.constant 0 : index
    %c0_48 = arith.constant 0 : index
    %120 = vector.load %arg7[%c0_47, %c0_48] : memref<1x128xf32, #tpu.memory_space<vmem>>, vector<1x128xf32>
    %121 = vector.broadcast %120 : vector<1x128xf32> to vector<32x128xf32>
    %122 = arith.addf %119, %121 : vector<32x128xf32>
    %c0_49 = arith.constant 0 : index
    %c0_50 = arith.constant 0 : index
    %123 = vector.load %arg12[%c0_49, %c0_50] : memref<32x128xf32, #tpu.memory_space<vmem>>, vector<32x128xf32>
    tpu.vector_store %arg12[%c0_49, %c0_50], %122 {strides = array<i32>} : memref<32x128xf32, #tpu.memory_space<vmem>>, vector<32x128xf32>,
    %c0_51 = arith.constant 0 : index
    %c0_52 = arith.constant 0 : index
    %124 = vector.load %arg6[%c0_51, %c0_52] : memref<32x128xf32, #tpu.memory_space<vmem>>, vector<32x128xf32>
    %c1 = arith.constant 1 : index
    %c0_53 = arith.constant 0 : index
    %c0_54 = arith.constant 0 : index
    %125 = vector.load %arg9[%c1, %c0_53, %c0_54] : memref<2x8x32xf32, #tpu.memory_space<vmem>>, vector<1x8x32xf32>
    %126 = vector.shape_cast %125 : vector<1x8x32xf32> to vector<8x32xf32>
    %c1_55 = arith.constant 1 : index
    %c0_56 = arith.constant 0 : index
    %c0_57 = arith.constant 0 : index
    %127 = vector.load %arg10[%c1_55, %c0_56, %c0_57] : memref<2x8x32xf32, #tpu.memory_space<vmem>>, vector<1x8x32xf32>
    %128 = vector.shape_cast %127 : vector<1x8x32xf32> to vector<8x32xf32>
    %c0_i32_58 = arith.constant 0 : i32
    %c8_i32_59 = arith.constant 8 : i32
    %129 = arith.muli %c0_i32_58, %c8_i32_59 : i32
    %130 = tpu.assume_multiple %129, 8 : i32
    %131 = arith.index_cast %130 : i32 to index
    %c0_60 = arith.constant 0 : index
    %132 = vector.load %arg12[%131, %c0_60] : memref<32x128xf32, #tpu.memory_space<vmem>>, vector<8x128xf32>
    %cst_61 = arith.constant dense<0.000000e+00> : vector<8x128xf32>
    %133 = tpu.matmul %126, %124, %cst_61 {dimension_numbers = #tpu.dot_dimension_numbers<[1], [0], [0], [1], [0, 0, 1, 1], [], []>} : vector<8x32xf32>, vector<32x128xf32>, vector<8x128xf32> -> vector<8x128xf32>
    %134 = arith.addf %132, %133 : vector<8x128xf32>
    %135 = arith.negf %134 : vector<8x128xf32>
    %136 = math.exp %135 : vector<8x128xf32>
    %cst_62 = arith.constant 1.000000e+00 : f32
    %137 = vector.broadcast %cst_62 : f32 to vector<8x128xf32>
    %138 = arith.addf %137, %136 : vector<8x128xf32>
    %139 = arith.divf %137, %138 : vector<8x128xf32>
    %140 = math.tanh %134 : vector<8x128xf32>
    %141 = vector.extract_strided_slice %139 {offsets = [0, 0], sizes = [8, 32], strides = [1, 1]} : vector<8x128xf32> to vector<8x32xf32>
    %142 = vector.extract_strided_slice %139 {offsets = [0, 32], sizes = [8, 32], strides = [1, 1]} : vector<8x128xf32> to vector<8x32xf32>
    %143 = vector.extract_strided_slice %140 {offsets = [0, 64], sizes = [8, 32], strides = [1, 1]} : vector<8x128xf32> to vector<8x32xf32>
    %144 = vector.extract_strided_slice %139 {offsets = [0, 96], sizes = [8, 32], strides = [1, 1]} : vector<8x128xf32> to vector<8x32xf32>
    %145 = arith.mulf %142, %128 : vector<8x32xf32>
    %146 = arith.mulf %141, %143 : vector<8x32xf32>
    %147 = arith.addf %145, %146 : vector<8x32xf32>
    %148 = math.tanh %147 : vector<8x32xf32>
    %149 = arith.mulf %144, %148 : vector<8x32xf32>
    %150 = arith.index_cast %130 : i32 to index
    %c0_63 = arith.constant 0 : index
    %151 = vector.load %arg8[%150, %c0_63] : memref<32x32xf32, #tpu.memory_space<vmem>>, vector<8x32xf32>
    tpu.vector_store %arg8[%150, %c0_63], %149 {strides = array<i32>} : memref<32x32xf32, #tpu.memory_space<vmem>>, vector<8x32xf32>,
    %c1_i32_64 = arith.constant 1 : i32
    %c8_i32_65 = arith.constant 8 : i32
    %152 = arith.muli %c1_i32_64, %c8_i32_65 : i32
    %153 = tpu.assume_multiple %152, 8 : i32
    %154 = arith.index_cast %153 : i32 to index
    %c0_66 = arith.constant 0 : index
    %155 = vector.load %arg12[%154, %c0_66] : memref<32x128xf32, #tpu.memory_space<vmem>>, vector<8x128xf32>
    %cst_67 = arith.constant dense<0.000000e+00> : vector<8x128xf32>
    %156 = tpu.matmul %149, %124, %cst_67 {dimension_numbers = #tpu.dot_dimension_numbers<[1], [0], [0], [1], [0, 0, 1, 1], [], []>} : vector<8x32xf32>, vector<32x128xf32>, vector<8x128xf32> -> vector<8x128xf32>
    %157 = arith.addf %155, %156 : vector<8x128xf32>
    %158 = arith.negf %157 : vector<8x128xf32>
    %159 = math.exp %158 : vector<8x128xf32>
    %cst_68 = arith.constant 1.000000e+00 : f32
    %160 = vector.broadcast %cst_68 : f32 to vector<8x128xf32>
    %161 = arith.addf %160, %159 : vector<8x128xf32>
    %162 = arith.divf %160, %161 : vector<8x128xf32>
    %163 = math.tanh %157 : vector<8x128xf32>
    %164 = vector.extract_strided_slice %162 {offsets = [0, 0], sizes = [8, 32], strides = [1, 1]} : vector<8x128xf32> to vector<8x32xf32>
    %165 = vector.extract_strided_slice %162 {offsets = [0, 32], sizes = [8, 32], strides = [1, 1]} : vector<8x128xf32> to vector<8x32xf32>
    %166 = vector.extract_strided_slice %163 {offsets = [0, 64], sizes = [8, 32], strides = [1, 1]} : vector<8x128xf32> to vector<8x32xf32>
    %167 = vector.extract_strided_slice %162 {offsets = [0, 96], sizes = [8, 32], strides = [1, 1]} : vector<8x128xf32> to vector<8x32xf32>
    %168 = arith.mulf %165, %147 : vector<8x32xf32>
    %169 = arith.mulf %164, %166 : vector<8x32xf32>
    %170 = arith.addf %168, %169 : vector<8x32xf32>
    %171 = math.tanh %170 : vector<8x32xf32>
    %172 = arith.mulf %167, %171 : vector<8x32xf32>
    %173 = arith.index_cast %153 : i32 to index
    %c0_69 = arith.constant 0 : index
    %174 = vector.load %arg8[%173, %c0_69] : memref<32x32xf32, #tpu.memory_space<vmem>>, vector<8x32xf32>
    tpu.vector_store %arg8[%173, %c0_69], %172 {strides = array<i32>} : memref<32x32xf32, #tpu.memory_space<vmem>>, vector<8x32xf32>,
    %c2_i32_70 = arith.constant 2 : i32
    %c8_i32_71 = arith.constant 8 : i32
    %175 = arith.muli %c2_i32_70, %c8_i32_71 : i32
    %176 = tpu.assume_multiple %175, 8 : i32
    %177 = arith.index_cast %176 : i32 to index
    %c0_72 = arith.constant 0 : index
    %178 = vector.load %arg12[%177, %c0_72] : memref<32x128xf32, #tpu.memory_space<vmem>>, vector<8x128xf32>
    %cst_73 = arith.constant dense<0.000000e+00> : vector<8x128xf32>
    %179 = tpu.matmul %172, %124, %cst_73 {dimension_numbers = #tpu.dot_dimension_numbers<[1], [0], [0], [1], [0, 0, 1, 1], [], []>} : vector<8x32xf32>, vector<32x128xf32>, vector<8x128xf32> -> vector<8x128xf32>
    %180 = arith.addf %178, %179 : vector<8x128xf32>
    %181 = arith.negf %180 : vector<8x128xf32>
    %182 = math.exp %181 : vector<8x128xf32>
    %cst_74 = arith.constant 1.000000e+00 : f32
    %183 = vector.broadcast %cst_74 : f32 to vector<8x128xf32>
    %184 = arith.addf %183, %182 : vector<8x128xf32>
    %185 = arith.divf %183, %184 : vector<8x128xf32>
    %186 = math.tanh %180 : vector<8x128xf32>
    %187 = vector.extract_strided_slice %185 {offsets = [0, 0], sizes = [8, 32], strides = [1, 1]} : vector<8x128xf32> to vector<8x32xf32>
    %188 = vector.extract_strided_slice %185 {offsets = [0, 32], sizes = [8, 32], strides = [1, 1]} : vector<8x128xf32> to vector<8x32xf32>
    %189 = vector.extract_strided_slice %186 {offsets = [0, 64], sizes = [8, 32], strides = [1, 1]} : vector<8x128xf32> to vector<8x32xf32>
    %190 = vector.extract_strided_slice %185 {offsets = [0, 96], sizes = [8, 32], strides = [1, 1]} : vector<8x128xf32> to vector<8x32xf32>
    %191 = arith.mulf %188, %170 : vector<8x32xf32>
    %192 = arith.mulf %187, %189 : vector<8x32xf32>
    %193 = arith.addf %191, %192 : vector<8x32xf32>
    %194 = math.tanh %193 : vector<8x32xf32>
    %195 = arith.mulf %190, %194 : vector<8x32xf32>
    %196 = arith.index_cast %176 : i32 to index
    %c0_75 = arith.constant 0 : index
    %197 = vector.load %arg8[%196, %c0_75] : memref<32x32xf32, #tpu.memory_space<vmem>>, vector<8x32xf32>
    tpu.vector_store %arg8[%196, %c0_75], %195 {strides = array<i32>} : memref<32x32xf32, #tpu.memory_space<vmem>>, vector<8x32xf32>,
    %c3_i32_76 = arith.constant 3 : i32
    %c8_i32_77 = arith.constant 8 : i32
    %198 = arith.muli %c3_i32_76, %c8_i32_77 : i32
    %199 = tpu.assume_multiple %198, 8 : i32
    %200 = arith.index_cast %199 : i32 to index
    %c0_78 = arith.constant 0 : index
    %201 = vector.load %arg12[%200, %c0_78] : memref<32x128xf32, #tpu.memory_space<vmem>>, vector<8x128xf32>
    %cst_79 = arith.constant dense<0.000000e+00> : vector<8x128xf32>
    %202 = tpu.matmul %195, %124, %cst_79 {dimension_numbers = #tpu.dot_dimension_numbers<[1], [0], [0], [1], [0, 0, 1, 1], [], []>} : vector<8x32xf32>, vector<32x128xf32>, vector<8x128xf32> -> vector<8x128xf32>
    %203 = arith.addf %201, %202 : vector<8x128xf32>
    %204 = arith.negf %203 : vector<8x128xf32>
    %205 = math.exp %204 : vector<8x128xf32>
    %cst_80 = arith.constant 1.000000e+00 : f32
    %206 = vector.broadcast %cst_80 : f32 to vector<8x128xf32>
    %207 = arith.addf %206, %205 : vector<8x128xf32>
    %208 = arith.divf %206, %207 : vector<8x128xf32>
    %209 = math.tanh %203 : vector<8x128xf32>
    %210 = vector.extract_strided_slice %208 {offsets = [0, 0], sizes = [8, 32], strides = [1, 1]} : vector<8x128xf32> to vector<8x32xf32>
    %211 = vector.extract_strided_slice %208 {offsets = [0, 32], sizes = [8, 32], strides = [1, 1]} : vector<8x128xf32> to vector<8x32xf32>
    %212 = vector.extract_strided_slice %209 {offsets = [0, 64], sizes = [8, 32], strides = [1, 1]} : vector<8x128xf32> to vector<8x32xf32>
    %213 = vector.extract_strided_slice %208 {offsets = [0, 96], sizes = [8, 32], strides = [1, 1]} : vector<8x128xf32> to vector<8x32xf32>
    %214 = arith.mulf %211, %193 : vector<8x32xf32>
    %215 = arith.mulf %210, %212 : vector<8x32xf32>
    %216 = arith.addf %214, %215 : vector<8x32xf32>
    %217 = math.tanh %216 : vector<8x32xf32>
    %218 = arith.mulf %213, %217 : vector<8x32xf32>
    %219 = arith.index_cast %199 : i32 to index
    %c0_81 = arith.constant 0 : index
    %220 = vector.load %arg8[%219, %c0_81] : memref<32x32xf32, #tpu.memory_space<vmem>>, vector<8x32xf32>
    tpu.vector_store %arg8[%219, %c0_81], %218 {strides = array<i32>} : memref<32x32xf32, #tpu.memory_space<vmem>>, vector<8x32xf32>,
    %c4_i32_82 = arith.constant 4 : i32
    %c1_83 = arith.constant 1 : index
    %c0_84 = arith.constant 0 : index
    %c0_85 = arith.constant 0 : index
    %221 = vector.load %arg9[%c1_83, %c0_84, %c0_85] : memref<2x8x32xf32, #tpu.memory_space<vmem>>, vector<1x8x32xf32>
    %222 = vector.shape_cast %221 : vector<1x8x32xf32> to vector<8x32xf32>
    %223 = vector.shape_cast %218 : vector<8x32xf32> to vector<1x8x32xf32>
    tpu.vector_store %arg9[%c1_83, %c0_84, %c0_85], %223 {strides = array<i32>} : memref<2x8x32xf32, #tpu.memory_space<vmem>>, vector<1x8x32xf32>,
    %c1_86 = arith.constant 1 : index
    %c0_87 = arith.constant 0 : index
    %c0_88 = arith.constant 0 : index
    %224 = vector.load %arg10[%c1_86, %c0_87, %c0_88] : memref<2x8x32xf32, #tpu.memory_space<vmem>>, vector<1x8x32xf32>
    %225 = vector.shape_cast %224 : vector<1x8x32xf32> to vector<8x32xf32>
    %226 = vector.shape_cast %216 : vector<8x32xf32> to vector<1x8x32xf32>
    tpu.vector_store %arg10[%c1_86, %c0_87, %c0_88], %226 {strides = array<i32>} : memref<2x8x32xf32, #tpu.memory_space<vmem>>, vector<1x8x32xf32>,
    return
  }
  func.func @transform_0(%arg0: i32) -> (i32, i32) {
    %c0_i32 = arith.constant 0 : i32
    %c0_i32_0 = arith.constant 0 : i32
    return %arg0, %c0_i32 : i32, i32
  }
  func.func @transform_1(%arg0: i32) -> (i32, i32) {
    %c0_i32 = arith.constant 0 : i32
    %c0_i32_0 = arith.constant 0 : i32
    %c0_i32_1 = arith.constant 0 : i32
    return %c0_i32, %c0_i32_0 : i32, i32
  }
  func.func @transform_2(%arg0: i32) -> (i32, i32) {
    %c0_i32 = arith.constant 0 : i32
    %c0_i32_0 = arith.constant 0 : i32
    %c0_i32_1 = arith.constant 0 : i32
    return %c0_i32, %c0_i32_0 : i32, i32
  }
  func.func @transform_3(%arg0: i32) -> (i32, i32) {
    %c0_i32 = arith.constant 0 : i32
    %c0_i32_0 = arith.constant 0 : i32
    %c0_i32_1 = arith.constant 0 : i32
    return %c0_i32, %c0_i32_0 : i32, i32
  }
  func.func @transform_4(%arg0: i32) -> (i32, i32) {
    %c0_i32 = arith.constant 0 : i32
    %c0_i32_0 = arith.constant 0 : i32
    %c0_i32_1 = arith.constant 0 : i32
    return %c0_i32, %c0_i32_0 : i32, i32
  }
  func.func @transform_5(%arg0: i32) -> (i32, i32) {
    %c0_i32 = arith.constant 0 : i32
    %c0_i32_0 = arith.constant 0 : i32
    %c0_i32_1 = arith.constant 0 : i32
    return %c0_i32, %c0_i32_0 : i32, i32
  }
  func.func @transform_6(%arg0: i32) -> (i32, i32) {
    %c0_i32 = arith.constant 0 : i32
    %c0_i32_0 = arith.constant 0 : i32
    %c0_i32_1 = arith.constant 0 : i32
    return %c0_i32, %c0_i32_0 : i32, i32
  }
  func.func @transform_7(%arg0: i32) -> (i32, i32) {
    %c0_i32 = arith.constant 0 : i32
    %c0_i32_0 = arith.constant 0 : i32
    return %arg0, %c0_i32 : i32, i32
  }
  func.func @transform_8(%arg0: i32) -> (i32, i32, i32) {
    %c0_i32 = arith.constant 0 : i32
    %c0_i32_0 = arith.constant 0 : i32
    %c0_i32_1 = arith.constant 0 : i32
    %c0_i32_2 = arith.constant 0 : i32
    return %c0_i32, %c0_i32_0, %c0_i32_1 : i32, i32, i32
  }
  func.func @transform_9(%arg0: i32) -> (i32, i32, i32) {
    %c0_i32 = arith.constant 0 : i32
    %c0_i32_0 = arith.constant 0 : i32
    %c0_i32_1 = arith.constant 0 : i32
    %c0_i32_2 = arith.constant 0 : i32
    return %c0_i32, %c0_i32_0, %c0_i32_1 : i32, i32, i32
  }
}

</mosaic_0001>

<llo_original>
// kernel: encoder_forward.1
$region0: #{encoder_forward.1}
  #allocation0 [shape = 'u32[]', space=smem, size = 0x4, offset = 0x4, fixed_abs, tag = 'smem constant byte address 0x4 - core index']
  #allocation1 [shape = 'u32[144,128]{1,0:T(1,128)}', space=vmem, size = 0x12000, scoped, tag = 'internal scratch']
  #allocation2 [shape = 'bf16[32,32]{1,0:T(8,128)(2,1)}', space=vmem, size = 0x2000, scoped, tag = 'scratch operand']
  #allocation3 [shape = 'f32[32,128]{1,0:T(8,128)}', space=vmem, size = 0x4000, scoped, tag = 'scratch operand']
  %s0 = inlined_call_operand.vmem [shape: bf16[64,32], index: 0, kind: input, shape index: {}]
  %s1 = inlined_call_operand.vmem [shape: bf16[32,128], index: 1, kind: input, shape index: {}]
  %s2 = inlined_call_operand.vmem [shape: f32[32,128], index: 2, kind: input, shape index: {}]
  %s3 = inlined_call_operand.vmem [shape: f32[1,128], index: 3, kind: input, shape index: {}]
  %s4 = inlined_call_operand.vmem [shape: bf16[32,128], index: 4, kind: input, shape index: {}]
  %s5 = inlined_call_operand.vmem [shape: f32[32,128], index: 5, kind: input, shape index: {}]
  %s6 = inlined_call_operand.vmem [shape: f32[1,128], index: 6, kind: input, shape index: {}]
  %s7 = inlined_call_operand.vmem [shape: f32[64,32], index: 7, kind: output, shape index: {0}]
  %s8 = inlined_call_operand.vmem [shape: f32[2,8,32], index: 8, kind: output, shape index: {1}]
  %s9 = inlined_call_operand.vmem [shape: f32[2,8,32], index: 9, kind: output, shape index: {2}]
  %10 = xla_tuple %s7, %s8, %s9
  %s11 = sld [smem:[#allocation0]]
  $region81: #{encoder_forward.1} parent=0
    _
  %s13 = ssub.s32 1, %s11
  %s14 = scalar_select 0, %s13, %s11
  loop: start=0, step=1, limit=4
  $region2: #{encoder_forward.1} parent=0 // loop_pre_header
    _
  $region3: #{encoder_forward.1} parent=0 // loop_header
    %s16 = sphi 0, %s20
    %p17 = scmp.ge.s32.totalorder %s16, 4
    %s26 = sphi 0, %s28
    %s29 = sphi 0, %s26
    %s30 = sphi 0, %s29
    %s46 = sphi 0, %s30
    %s50 = sphi 0, %s50
    %s52 = sphi 0, %s50
    %s53 = sphi 0, %s52
    %s67 = sphi 0, %s53
    %s71 = sphi 0, %s71
    %s73 = sphi 0, %s71
    %s74 = sphi 0, %s73
    %s88 = sphi 0, %s74
    %s92 = sphi 0, %s92
    %s94 = sphi 0, %s92
    %s95 = sphi 0, %s94
    %s109 = sphi 0, %s95
    %s113 = sphi 0, %s113
    %s115 = sphi 0, %s113
    %s116 = sphi 0, %s115
    %s130 = sphi 0, %s116
    %s134 = sphi 0, %s134
    %s136 = sphi 0, %s134
    %s137 = sphi 0, %s136
    %s151 = sphi 0, %s137
    %s155 = sphi 0, %s155
    %s157 = sphi 0, %s155
    %s158 = sphi 0, %s157
    %s172 = sphi 0, %s158
    %s178 = sphi 0, %s180
    %s181 = sphi 0, %s178
    %s182 = sphi 0, %s181
    %s198 = sphi 0, %s182
    %s202 = sphi 0, %s202
    %s204 = sphi 0, %s202
    %s205 = sphi 0, %s204
    %s219 = sphi 0, %s205
    %s223 = sphi 0, %s223
    %s225 = sphi 0, %s223
    %s226 = sphi 0, %s225
    %s240 = sphi 0, %s226
  $region4: #{encoder_forward.1} parent=0 // loop_header_branch
    %19 = sbr.rel (%p17) target = $region8
  $region5: #{encoder_forward.1} parent=0 // loop_body
    %s21 = ssub.s32 %s16, 1
    %s22 = ssub.s32 %s16, 2
    %s23 = sadd.s32 %s16, 1
    %s24 = ssub.s32 %s16, %s23
    %p25 = scmp.eq.s32.totalorder %s24, 0
    %s27 = sadd.s32 %s26, 1
    %s28 = scalar_select %p25, %s26, %s27
    %p31 = pneg %p25
    %p32 = scmp.eq.s32.totalorder %s16, 1
    %p33 = por %p31, %p32
    %p34 = scmp.ne.s32.totalorder %s26, %s29
    %p35 = scmp.eq.s32.totalorder %s16, 0
    %p36 = por %p34, %p35
    %p37 = scmp.ne.s32.totalorder %s26, %s29
    %p38 = scmp.eq.s32.totalorder %s21, 1
    %p39 = por %p37, %p38
    %p40 = scmp.ne.s32.totalorder %s29, %s30
    %p41 = scmp.eq.s32.totalorder %s21, 0
    %p42 = por %p40, %p41
    %p43 = scmp.ne.s32.totalorder %s29, %s30
    %p44 = scmp.eq.s32.totalorder %s22, 1
    %p45 = por %p43, %p44
    %p47 = scmp.ne.s32.totalorder %s30, %s46
    %p48 = scmp.eq.s32.totalorder %s22, 0
    %p49 = por %p47, %p48
    %s51 = sadd.s32 %s50, 1
    %p54 = scmp.eq.s32.totalorder %s16, 1
    %p55 = scmp.ne.s32.totalorder %s50, %s52
    %p56 = scmp.eq.s32.totalorder %s16, 0
    %p57 = por %p55, %p56
    %p58 = scmp.ne.s32.totalorder %s50, %s52
    %p59 = scmp.eq.s32.totalorder %s21, 1
    %p60 = por %p58, %p59
    %p61 = scmp.ne.s32.totalorder %s52, %s53
    %p62 = scmp.eq.s32.totalorder %s21, 0
    %p63 = por %p61, %p62
    %p64 = scmp.ne.s32.totalorder %s52, %s53
    %p65 = scmp.eq.s32.totalorder %s22, 1
    %p66 = por %p64, %p65
    %p68 = scmp.ne.s32.totalorder %s53, %s67
    %p69 = scmp.eq.s32.totalorder %s22, 0
    %p70 = por %p68, %p69
    %s72 = sadd.s32 %s71, 1
    %p75 = scmp.eq.s32.totalorder %s16, 1
    %p76 = scmp.ne.s32.totalorder %s71, %s73
    %p77 = scmp.eq.s32.totalorder %s16, 0
    %p78 = por %p76, %p77
    %p79 = scmp.ne.s32.totalorder %s71, %s73
    %p80 = scmp.eq.s32.totalorder %s21, 1
    %p81 = por %p79, %p80
    %p82 = scmp.ne.s32.totalorder %s73, %s74
    %p83 = scmp.eq.s32.totalorder %s21, 0
    %p84 = por %p82, %p83
    %p85 = scmp.ne.s32.totalorder %s73, %s74
    %p86 = scmp.eq.s32.totalorder %s22, 1
    %p87 = por %p85, %p86
    %p89 = scmp.ne.s32.totalorder %s74, %s88
    %p90 = scmp.eq.s32.totalorder %s22, 0
    %p91 = por %p89, %p90
    %s93 = sadd.s32 %s92, 1
    %p96 = scmp.eq.s32.totalorder %s16, 1
    %p97 = scmp.ne.s32.totalorder %s92, %s94
    %p98 = scmp.eq.s32.totalorder %s16, 0
    %p99 = por %p97, %p98
    %p100 = scmp.ne.s32.totalorder %s92, %s94
    %p101 = scmp.eq.s32.totalorder %s21, 1
    %p102 = por %p100, %p101
    %p103 = scmp.ne.s32.totalorder %s94, %s95
    %p104 = scmp.eq.s32.totalorder %s21, 0
    %p105 = por %p103, %p104
    %p106 = scmp.ne.s32.totalorder %s94, %s95
    %p107 = scmp.eq.s32.totalorder %s22, 1
    %p108 = por %p106, %p107
    %p110 = scmp.ne.s32.totalorder %s95, %s109
    %p111 = scmp.eq.s32.totalorder %s22, 0
    %p112 = por %p110, %p111
    %s114 = sadd.s32 %s113, 1
    %p117 = scmp.eq.s32.totalorder %s16, 1
    %p118 = scmp.ne.s32.totalorder %s113, %s115
    %p119 = scmp.eq.s32.totalorder %s16, 0
    %p120 = por %p118, %p119
    %p121 = scmp.ne.s32.totalorder %s113, %s115
    %p122 = scmp.eq.s32.totalorder %s21, 1
    %p123 = por %p121, %p122
    %p124 = scmp.ne.s32.totalorder %s115, %s116
    %p125 = scmp.eq.s32.totalorder %s21, 0
    %p126 = por %p124, %p125
    %p127 = scmp.ne.s32.totalorder %s115, %s116
    %p128 = scmp.eq.s32.totalorder %s22, 1
    %p129 = por %p127, %p128
    %p131 = scmp.ne.s32.totalorder %s116, %s130
    %p132 = scmp.eq.s32.totalorder %s22, 0
    %p133 = por %p131, %p132
    %s135 = sadd.s32 %s134, 1
    %p138 = scmp.eq.s32.totalorder %s16, 1
    %p139 = scmp.ne.s32.totalorder %s134, %s136
    %p140 = scmp.eq.s32.totalorder %s16, 0
    %p141 = por %p139, %p140
    %p142 = scmp.ne.s32.totalorder %s134, %s136
    %p143 = scmp.eq.s32.totalorder %s21, 1
    %p144 = por %p142, %p143
    %p145 = scmp.ne.s32.totalorder %s136, %s137
    %p146 = scmp.eq.s32.totalorder %s21, 0
    %p147 = por %p145, %p146
    %p148 = scmp.ne.s32.totalorder %s136, %s137
    %p149 = scmp.eq.s32.totalorder %s22, 1
    %p150 = por %p148, %p149
    %p152 = scmp.ne.s32.totalorder %s137, %s151
    %p153 = scmp.eq.s32.totalorder %s22, 0
    %p154 = por %p152, %p153
    %s156 = sadd.s32 %s155, 1
    %p159 = scmp.eq.s32.totalorder %s16, 1
    %p160 = scmp.ne.s32.totalorder %s155, %s157
    %p161 = scmp.eq.s32.totalorder %s16, 0
    %p162 = por %p160, %p161
    %p163 = scmp.ne.s32.totalorder %s155, %s157
    %p164 = scmp.eq.s32.totalorder %s21, 1
    %p165 = por %p163, %p164
    %p166 = scmp.ne.s32.totalorder %s157, %s158
    %p167 = scmp.eq.s32.totalorder %s21, 0
    %p168 = por %p166, %p167
    %p169 = scmp.ne.s32.totalorder %s157, %s158
    %p170 = scmp.eq.s32.totalorder %s22, 1
    %p171 = por %p169, %p170
    %p173 = scmp.ne.s32.totalorder %s158, %s172
    %p174 = scmp.eq.s32.totalorder %s22, 0
    %p175 = por %p173, %p174
    %s176 = ssub.s32 %s16, %s23
    %p177 = scmp.eq.s32.totalorder %s176, 0
    %s179 = sadd.s32 %s178, 1
    %s180 = scalar_select %p177, %s178, %s179
    %p183 = pneg %p177
    %p184 = scmp.eq.s32.totalorder %s16, 1
    %p185 = por %p183, %p184
    %p186 = scmp.ne.s32.totalorder %s178, %s181
    %p187 = scmp.eq.s32.totalorder %s16, 0
    %p188 = por %p186, %p187
    %p189 = scmp.ne.s32.totalorder %s178, %s181
    %p190 = scmp.eq.s32.totalorder %s21, 1
    %p191 = por %p189, %p190
    %p192 = scmp.ne.s32.totalorder %s181, %s182
    %p193 = scmp.eq.s32.totalorder %s21, 0
    %p194 = por %p192, %p193
    %p195 = scmp.ne.s32.totalorder %s181, %s182
    %p196 = scmp.eq.s32.totalorder %s22, 1
    %p197 = por %p195, %p196
    %p199 = scmp.ne.s32.totalorder %s182, %s198
    %p200 = scmp.eq.s32.totalorder %s22, 0
    %p201 = por %p199, %p200
    %s203 = sadd.s32 %s202, 1
    %p206 = scmp.eq.s32.totalorder %s16, 1
    %p207 = scmp.ne.s32.totalorder %s202, %s204
    %p208 = scmp.eq.s32.totalorder %s16, 0
    %p209 = por %p207, %p208
    %p210 = scmp.ne.s32.totalorder %s202, %s204
    %p211 = scmp.eq.s32.totalorder %s21, 1
    %p212 = por %p210, %p211
    %p213 = scmp.ne.s32.totalorder %s204, %s205
    %p214 = scmp.eq.s32.totalorder %s21, 0
    %p215 = por %p213, %p214
    %p216 = scmp.ne.s32.totalorder %s204, %s205
    %p217 = scmp.eq.s32.totalorder %s22, 1
    %p218 = por %p216, %p217
    %p220 = scmp.ne.s32.totalorder %s205, %s219
    %p221 = scmp.eq.s32.totalorder %s22, 0
    %p222 = por %p220, %p221
    %s224 = sadd.s32 %s223, 1
    %p227 = scmp.eq.s32.totalorder %s16, 1
    %p228 = scmp.ne.s32.totalorder %s223, %s225
    %p229 = scmp.eq.s32.totalorder %s16, 0
    %p230 = por %p228, %p229
    %p231 = scmp.ne.s32.totalorder %s223, %s225
    %p232 = scmp.eq.s32.totalorder %s21, 1
    %p233 = por %p231, %p232
    %p234 = scmp.ne.s32.totalorder %s225, %s226
    %p235 = scmp.eq.s32.totalorder %s21, 0
    %p236 = por %p234, %p235
    %p237 = scmp.ne.s32.totalorder %s225, %s226
    %p238 = scmp.eq.s32.totalorder %s22, 1
    %p239 = por %p237, %p238
    %p241 = scmp.ne.s32.totalorder %s226, %s240
    %p242 = scmp.eq.s32.totalorder %s22, 0
    %p243 = por %p241, %p242
    %p244 = scmp.le.s32.totalorder 1, %s16
    %p245 = scmp.lt.s32.totalorder %s16, 3
    %p246 = pnand %p244, %p245
    %p247 = pneg %p246
    // Predicated region
    $region9: #{encoder_forward.1} parent=5 // pred_check
      _
    $region10: #{encoder_forward.1} parent=5 // pred_check_branch
      %249 = sbr.rel (%p246) target = $region12
    $region11: #{encoder_forward.1} parent=5 // pred_region
      %s250 = ssub.s32 %s16, 1
      // Predicated region
      $region13: #{encoder_forward.1} parent=11 // pred_check
        %p251 = pneg %p63
      $region14: #{encoder_forward.1} parent=11 // pred_check_branch
        %253 = sbr.rel (%p251) target = $region16
      $region15: #{encoder_forward.1} parent=11 // pred_region
        _
      $region16: #{encoder_forward.1} parent=11 // pred_fallthru
        _
      // Predicated region
      $region17: #{encoder_forward.1} parent=11 // pred_check
        %p254 = pneg %p84
      $region18: #{encoder_forward.1} parent=11 // pred_check_branch
        %256 = sbr.rel (%p254) target = $region20
      $region19: #{encoder_forward.1} parent=11 // pred_region
        _
      $region20: #{encoder_forward.1} parent=11 // pred_fallthru
        _
      // Predicated region
      $region21: #{encoder_forward.1} parent=11 // pred_check
        %p257 = pneg %p105
      $region22: #{encoder_forward.1} parent=11 // pred_check_branch
        %259 = sbr.rel (%p257) target = $region24
      $region23: #{encoder_forward.1} parent=11 // pred_region
        _
      $region24: #{encoder_forward.1} parent=11 // pred_fallthru
        _
      // Predicated region
      $region25: #{encoder_forward.1} parent=11 // pred_check
        %p260 = pneg %p126
      $region26: #{encoder_forward.1} parent=11 // pred_check_branch
        %262 = sbr.rel (%p260) target = $region28
      $region27: #{encoder_forward.1} parent=11 // pred_region
        _
      $region28: #{encoder_forward.1} parent=11 // pred_fallthru
        _
      // Predicated region
      $region29: #{encoder_forward.1} parent=11 // pred_check
        %p263 = pneg %p147
      $region30: #{encoder_forward.1} parent=11 // pred_check_branch
        %265 = sbr.rel (%p263) target = $region32
      $region31: #{encoder_forward.1} parent=11 // pred_region
        _
      $region32: #{encoder_forward.1} parent=11 // pred_fallthru
        _
      // Predicated region
      $region33: #{encoder_forward.1} parent=11 // pred_check
        %p266 = pneg %p168
      $region34: #{encoder_forward.1} parent=11 // pred_check_branch
        %268 = sbr.rel (%p266) target = $region36
      $region35: #{encoder_forward.1} parent=11 // pred_region
        _
      $region36: #{encoder_forward.1} parent=11 // pred_fallthru
        _
    $region12: #{encoder_forward.1} parent=5 // pred_fallthru
      _
    %p269 = scmp.lt.s32.totalorder %s16, 2
    // Predicated region
    $region37: #{encoder_forward.1} parent=5 // pred_check
      %p270 = pneg %p269
    $region38: #{encoder_forward.1} parent=5 // pred_check_branch
      %272 = sbr.rel (%p270) target = $region40
    $region39: #{encoder_forward.1} parent=5 // pred_region
      // Predicated region
      $region41: #{encoder_forward.1} parent=39 // pred_check
        %p273 = pneg %p36
      $region42: #{encoder_forward.1} parent=39 // pred_check_branch
        %275 = sbr.rel (%p273) target = $region44
      $region43: #{encoder_forward.1} parent=39 // pred_region
        %s276 = smul.u32 4, %s16
        %p277 = scmp.lt.s32.totalorder %s276, 7
        %s278 = scalar_select %p277, %s276, 7
        %s279 = smul.addr %s278, 4
        %s280 = scalar_lea.vmem %s0, %s279
        %s281 = smul.u32 4, %s16
      $region44: #{encoder_forward.1} parent=39 // pred_fallthru
        _
    $region40: #{encoder_forward.1} parent=5 // pred_fallthru
      _
    %p282 = scmp.le.s32.totalorder 1, %s16
    %p283 = scmp.lt.s32.totalorder %s16, 3
    %p284 = pnand %p282, %p283
    %p285 = pneg %p284
    // Predicated region
    $region45: #{encoder_forward.1} parent=5 // pred_check
      _
    $region46: #{encoder_forward.1} parent=5 // pred_check_branch
      %287 = sbr.rel (%p284) target = $region48
    $region47: #{encoder_forward.1} parent=5 // pred_region
      %s288 = ssub.s32 %s16, 1
      %s289 = smul.u32 4, %s21
      %p290 = scmp.lt.s32.totalorder %s289, 7
      %s291 = scalar_select %p290, %s289, 7
      %s292 = smul.addr %s291, 4
      %s293 = scalar_lea.vmem %s0, %s292
      %p294 = pneg %p42
      %p295 = pneg %p39
      %p296 = pneg %p63
      %p297 = pneg %p60
      %p298 = pneg %p84
      %p299 = pneg %p81
      %p300 = pneg %p105
      %p301 = pneg %p102
      %p302 = pneg %p126
      %p303 = pneg %p123
      %p304 = pneg %p147
      %p305 = pneg %p144
      %p306 = pneg %p168
      %p307 = pneg %p165
      %p308 = pneg %p194
      %p309 = pneg %p191
      %s310 = smul.u32 4, %s21
      %p311 = scmp.lt.s32.totalorder %s310, 7
      %s312 = scalar_select %p311, %s310, 7
      %s313 = smul.addr %s312, 8
      %s314 = scalar_lea.vmem %s7, %s313
      %p315 = pneg %p215
      %p316 = pneg %p212
      %p317 = pneg %p236
      %p318 = pneg %p233
      %s319 = smul.u32 4, %s21
      %p320 = scmp.lt.s32.totalorder %s319, 7
      %s321 = scalar_select %p320, %s319, 7
      %s322 = smul.addr %s321, 4
      %s323 = scalar_lea.vmem %s0, %s322
      %s324 = smul.u32 4, %s21
      %s325 = smul.u32 4, %s21
      %p326 = scmp.lt.s32.totalorder %s325, 7
      %s327 = scalar_select %p326, %s325, 7
      %s328 = smul.addr %s327, 8
      %s329 = scalar_lea.vmem %s7, %s328
      %s330 = smul.u32 4, %s21
      %p332 = scmp.eq.s32.totalorder %s21, 0
      // Predicated region
      $region49: #{encoder_forward.1} parent=47 // pred_check
        %p333 = pneg %p332
      $region50: #{encoder_forward.1} parent=47 // pred_check_branch
        %335 = sbr.rel (%p333) target = $region52
      $region51: #{encoder_forward.1} parent=47 // pred_region
        %vm336 = vcmask 261120
        %337 = vst.msk [vmem:[%s8] sm:$0xff] %vm336, 0.0
        %338 = vst.msk [vmem:[%s8 + $0x8] sm:$0xff] %vm336, 0.0
        %339 = vst.msk [vmem:[%s9] sm:$0xff] %vm336, 0.0
        %340 = vst.msk [vmem:[%s9 + $0x8] sm:$0xff] %vm336, 0.0
      $region52: #{encoder_forward.1} parent=47 // pred_fallthru
        _
      %v341 = vld [vmem:[%s323] sm:$0xf]
      %v342 = vld [vmem:[%s323 + $0x4] sm:$0xf]
      %v343 = vld [vmem:[%s323 + $0x8] sm:$0xf]
      %v344 = vld [vmem:[%s323 + $0xc] sm:$0xf]
      %v345 = vld [vmem:[%s1] sm:$0xf]
      %v346 = vld [vmem:[%s1 + $0x4] sm:$0xf]
      %v347 = vld [vmem:[%s1 + $0x8] sm:$0xf]
      %v348 = vld [vmem:[%s1 + $0xc] sm:$0xf]
      %v349 = vld [vmem:[%s3] sm:$0x1]
      %v351 = vlaneseq
      %v352 = vshrl.u32 %v351, 7
      %v353 = vsub.s32 0, %v352
      %v354 = vrot.slane %v349, %v353
      %v360 = vunpack.c.l.b16 %v341
      %v361 = vunpack.c.l.b16 %v342
      %v362 = vunpack.c.l.b16 %v343
      %v363 = vunpack.c.l.b16 %v344
      %v364 = vpack.c.b16 %v361, %v360
      %v365 = vpack.c.b16 %v363, %v362
      %v370 = vunpack.c.l.b16 %v345
      %v371 = vunpack.c.l.b16 %v346
      %v372 = vunpack.c.l.b16 %v347
      %v373 = vunpack.c.l.b16 %v348
      %v374 = vpack.c.b16 %v371, %v370
      %v375 = vpack.c.b16 %v373, %v372
      %vm378 = vcmask 261120
      %v380 = vsel %vm378, %v364, 0
      %v383 = vsel %vm378, %v365, 0
      %385 = vmatprep.subr.bf16.mxu0 0
      %386 = vmatpush1.bf16.msra.mxu0 0
      %387 = vmatprep.subr.bf16.mxu0 0
      %388 = vmatpush1.bf16.msra.mxu0 0
      %389 = vmatprep.subr.bf16.mxu0 0
      %390 = vmatpush1.bf16.msra.mxu0 0
      %391 = vmatprep.subr.bf16.mxu0 0
      %392 = vmatpush1.bf16.msra.mxu0 0
      %393 = vmatprep.subr.bf16.mxu0 0
      %394 = vmatpush1.bf16.msra.mxu0 0
      %395 = vmatprep.subr.bf16.mxu0 0
      %396 = vmatpush1.bf16.msra.mxu0 0
      %397 = vmatprep.subr.bf16.mxu0 0
      %398 = vmatpush1.bf16.msra.mxu0 %v375
      %399 = vmatprep.subr.bf16.mxu0 0
      %400 = vmatpush1.bf16.msra.mxu0 %v374
      %401 = vmatprep.subr.bf16.mxu0 0
      %402 = vmatpush2.bf16.msra.mxu0 0
      %403 = vmatprep.subr.bf16.mxu0 0
      %404 = vmatpush2.bf16.msra.mxu0 0
      %405 = vmatprep.subr.bf16.mxu0 0
      %406 = vmatpush2.bf16.msra.mxu0 0
      %407 = vmatprep.subr.bf16.mxu0 0
      %408 = vmatpush2.bf16.msra.mxu0 0
      %409 = vmatprep.subr.bf16.mxu0 0
      %410 = vmatpush2.bf16.msra.mxu0 0
      %411 = vmatprep.subr.bf16.mxu0 0
      %412 = vmatpush2.bf16.msra.mxu0 0
      %413 = vmatprep.subr.bf16.mxu0 0
      %414 = vmatpush2.bf16.msra.mxu0 0
      %415 = vmatprep.subr.bf16.mxu0 0
      %416 = vmatpush2.bf16.msra.mxu0 0
      %417 = vmatprep.mubr.bf16.mxu0 0
      %418 = vmatmul.mubr.bf16.gmra.mxu0 %v380
      %v419 = vpop.f32.mrf.mxu0
      %v420 = vadd.f32 %v354, %v419
      %v421 = vpop.f32.mrf.mxu0
      %v422 = vpop.f32.mrf.mxu0
      %v423 = vadd.f32 %v354, %v422
      %v424 = vpop.f32.mrf.mxu0
      %425 = vmatprep.mubr.bf16.mxu0 0
      %426 = vmatmul.mubr.bf16.gmra.mxu0 %v383
      %v427 = vpop.f32.mrf.mxu0
      %v428 = vadd.f32 %v354, %v427
      %v429 = vpop.f32.mrf.mxu0
      %v430 = vpop.f32.mrf.mxu0
      %v431 = vadd.f32 %v354, %v430
      %v432 = vpop.f32.mrf.mxu0
      %433 = vdwg.mxu0
      %434 = vst [vmem:[#allocation3] sm:$0xff] %v420
      %435 = vst [vmem:[#allocation3 + $0x8] sm:$0xff] %v423
      %436 = vst [vmem:[#allocation3 + $0x10] sm:$0xff] %v428
      %437 = vst [vmem:[#allocation3 + $0x18] sm:$0xff] %v431
      %v438 = vld [vmem:[%s2] sm:$0xff]
      %v439 = vld [vmem:[%s2 + $0x8] sm:$0xff]
      %v440 = vld [vmem:[%s2 + $0x10] sm:$0xff]
      %v441 = vld [vmem:[%s2 + $0x18] sm:$0xff]
      %v442 = vld [vmem:[%s8] sm:$0xff]
      %v443 = vld [vmem:[%s9] sm:$0xff]
      %v444 = vld [vmem:[#allocation3] sm:$0xff]
      %v446 = vsel %vm378, %v442, 0
      %448 = vmatprep.subr.mxu0 0.0
      %449 = vmatpush1.msra.mxu0 0.0
      %450 = vmatprep.subr.mxu0 0.0
      %451 = vmatpush1.msra.mxu0 0.0
      %452 = vmatprep.subr.mxu0 0.0
      %453 = vmatpush1.msra.mxu0 0.0
      %454 = vmatprep.subr.mxu0 0.0
      %455 = vmatpush1.msra.mxu0 0.0
      %456 = vmatprep.subr.mxu0 0.0
      %457 = vmatpush1.msra.mxu0 0.0
      %458 = vmatprep.subr.mxu0 0.0
      %459 = vmatpush1.msra.mxu0 0.0
      %460 = vmatprep.subr.mxu0 0.0
      %461 = vmatpush1.msra.mxu0 0.0
      %462 = vmatprep.subr.mxu0 0.0
      %463 = vmatpush1.msra.mxu0 0.0
      %464 = vmatprep.subr.mxu0 0.0
      %465 = vmatpush1.msra.mxu0 0.0
      %466 = vmatprep.subr.mxu0 0.0
      %467 = vmatpush1.msra.mxu0 0.0
      %468 = vmatprep.subr.mxu0 0.0
      %469 = vmatpush1.msra.mxu0 0.0
      %470 = vmatprep.subr.mxu0 0.0
      %471 = vmatpush1.msra.mxu0 0.0
      %472 = vmatprep.subr.mxu0 0.0
      %473 = vmatpush1.msra.mxu0 %v441
      %474 = vmatprep.subr.mxu0 0.0
      %475 = vmatpush1.msra.mxu0 %v440
      %476 = vmatprep.subr.mxu0 0.0
      %477 = vmatpush1.msra.mxu0 %v439
      %478 = vmatprep.subr.mxu0 0.0
      %479 = vmatpush1.msra.mxu0 %v438
      %480 = vmatprep.subr.mxu0 0.0
      %481 = vmatpush2.msra.mxu0 0.0
      %482 = vmatprep.subr.mxu0 0.0
      %483 = vmatpush2.msra.mxu0 0.0
      %484 = vmatprep.subr.mxu0 0.0
      %485 = vmatpush2.msra.mxu0 0.0
      %486 = vmatprep.subr.mxu0 0.0
      %487 = vmatpush2.msra.mxu0 0.0
      %488 = vmatprep.subr.mxu0 0.0
      %489 = vmatpush2.msra.mxu0 0.0
      %490 = vmatprep.subr.mxu0 0.0
      %491 = vmatpush2.msra.mxu0 0.0
      %492 = vmatprep.subr.mxu0 0.0
      %493 = vmatpush2.msra.mxu0 0.0
      %494 = vmatprep.subr.mxu0 0.0
      %495 = vmatpush2.msra.mxu0 0.0
      %496 = vmatprep.subr.mxu0 0.0
      %497 = vmatpush2.msra.mxu0 0.0
      %498 = vmatprep.subr.mxu0 0.0
      %499 = vmatpush2.msra.mxu0 0.0
      %500 = vmatprep.subr.mxu0 0.0
      %501 = vmatpush2.msra.mxu0 0.0
      %502 = vmatprep.subr.mxu0 0.0
      %503 = vmatpush2.msra.mxu0 0.0
      %504 = vmatprep.subr.mxu0 0.0
      %505 = vmatpush2.msra.mxu0 0.0
      %506 = vmatprep.subr.mxu0 0.0
      %507 = vmatpush2.msra.mxu0 0.0
      %508 = vmatprep.subr.mxu0 0.0
      %509 = vmatpush2.msra.mxu0 0.0
      %510 = vmatprep.subr.mxu0 0.0
      %511 = vmatpush2.msra.mxu0 0.0
      %512 = vmatprep.mubr.f32.mxu0 0.0
      %513 = vmatmul.mubr.f32.gmra.mxu0 %v446
      %v514 = vpop.f32.mrf.mxu0
      %v515 = vadd.f32 0.0, %v514
      %v516 = vpop.f32.mrf.mxu0
      %517 = vdwg.mxu0
      %v518 = vadd.f32 %v444, %v515
      %v519 = vxor.u32 %v518, 2147483648
      %v520 = vmul.f32 %v519, 1.442695
      %v521 = vpow.pop %v520
      %v522 = vadd.f32 %v521, 1.0
      %v523 = vrcp.pop %v522
      %v524 = vmul.f32 1.0, %v523
      %v525 = vtanh.pop %v518
      %527 = vrot.lane.b32.xlu0 %v443, 32
      %v528 = vpop.permute.xlu0 %527
      %v530 = vmul.f32 %v524, %v528
      %532 = vrot.lane.b32.xlu0 %v525, 64
      %v533 = vpop.permute.xlu0 %532
      %v535 = vmul.f32 %v524, %v533
      %537 = vrot.lane.b32.xlu0 %v535, 32
      %v538 = vpop.permute.xlu0 %537
      %v540 = vadd.f32 %v530, %v538
      %v541 = vtanh.pop %v540
      %543 = vrot.lane.b32.xlu0 %v541, 64
      %v544 = vpop.permute.xlu0 %543
      %v546 = vmul.f32 %v524, %v544
      %v547 = vpack.c.bf16 %v546, %v546
      %v549 = vunpack.c.l.b16 %v547
      %v550 = vpack.c.b16 %v549, %v549
      %551 = vrot.lane.b32.xlu0 %v550, 32
      %v552 = vpop.permute.xlu0 %551
      %vm554 = vcmask 257024
      %555 = vst.msk [vmem:[#allocation2] sm:$0xf] %vm554, %v552
      %s556 = scalar_lea.vmem [#allocation3], 8
      %v557 = vld [vmem:[%s556] sm:$0xff]
      %559 = vrot.lane.b32.xlu0 %v546, 32
      %v560 = vpop.permute.xlu0 %559
      %v561 = vsel %vm378, %v560, 0
      %563 = vmatprep.subr.mxu0 0.0
      %564 = vmatpush1.msra.mxu0 0.0
      %565 = vmatprep.subr.mxu0 0.0
      %566 = vmatpush1.msra.mxu0 0.0
      %567 = vmatprep.subr.mxu0 0.0
      %568 = vmatpush1.msra.mxu0 0.0
      %569 = vmatprep.subr.mxu0 0.0
      %570 = vmatpush1.msra.mxu0 0.0
      %571 = vmatprep.subr.mxu0 0.0
      %572 = vmatpush1.msra.mxu0 0.0
      %573 = vmatprep.subr.mxu0 0.0
      %574 = vmatpush1.msra.mxu0 0.0
      %575 = vmatprep.subr.mxu0 0.0
      %576 = vmatpush1.msra.mxu0 0.0
      %577 = vmatprep.subr.mxu0 0.0
      %578 = vmatpush1.msra.mxu0 0.0
      %579 = vmatprep.subr.mxu0 0.0
      %580 = vmatpush1.msra.mxu0 0.0
      %581 = vmatprep.subr.mxu0 0.0
      %582 = vmatpush1.msra.mxu0 0.0
      %583 = vmatprep.subr.mxu0 0.0
      %584 = vmatpush1.msra.mxu0 0.0
      %585 = vmatprep.subr.mxu0 0.0
      %586 = vmatpush1.msra.mxu0 0.0
      %587 = vmatprep.subr.mxu0 0.0
      %588 = vmatpush1.msra.mxu0 %v441
      %589 = vmatprep.subr.mxu0 0.0
      %590 = vmatpush1.msra.mxu0 %v440
      %591 = vmatprep.subr.mxu0 0.0
      %592 = vmatpush1.msra.mxu0 %v439
      %593 = vmatprep.subr.mxu0 0.0
      %594 = vmatpush1.msra.mxu0 %v438
      %595 = vmatprep.subr.mxu0 0.0
      %596 = vmatpush2.msra.mxu0 0.0
      %597 = vmatprep.subr.mxu0 0.0
      %598 = vmatpush2.msra.mxu0 0.0
      %599 = vmatprep.subr.mxu0 0.0
      %600 = vmatpush2.msra.mxu0 0.0
      %601 = vmatprep.subr.mxu0 0.0
      %602 = vmatpush2.msra.mxu0 0.0
      %603 = vmatprep.subr.mxu0 0.0
      %604 = vmatpush2.msra.mxu0 0.0
      %605 = vmatprep.subr.mxu0 0.0
      %606 = vmatpush2.msra.mxu0 0.0
      %607 = vmatprep.subr.mxu0 0.0
      %608 = vmatpush2.msra.mxu0 0.0
      %609 = vmatprep.subr.mxu0 0.0
      %610 = vmatpush2.msra.mxu0 0.0
      %611 = vmatprep.subr.mxu0 0.0
      %612 = vmatpush2.msra.mxu0 0.0
      %613 = vmatprep.subr.mxu0 0.0
      %614 = vmatpush2.msra.mxu0 0.0
      %615 = vmatprep.subr.mxu0 0.0
      %616 = vmatpush2.msra.mxu0 0.0
      %617 = vmatprep.subr.mxu0 0.0
      %618 = vmatpush2.msra.mxu0 0.0
      %619 = vmatprep.subr.mxu0 0.0
      %620 = vmatpush2.msra.mxu0 0.0
      %621 = vmatprep.subr.mxu0 0.0
      %622 = vmatpush2.msra.mxu0 0.0
      %623 = vmatprep.subr.mxu0 0.0
      %624 = vmatpush2.msra.mxu0 0.0
      %625 = vmatprep.subr.mxu0 0.0
      %626 = vmatpush2.msra.mxu0 0.0
      %627 = vmatprep.mubr.f32.mxu0 0.0
      %628 = vmatmul.mubr.f32.gmra.mxu0 %v561
      %v629 = vpop.f32.mrf.mxu0
      %v630 = vadd.f32 0.0, %v629
      %v631 = vpop.f32.mrf.mxu0
      %632 = vdwg.mxu0
      %v633 = vadd.f32 %v557, %v630
      %v634 = vxor.u32 %v633, 2147483648
      %v635 = vmul.f32 %v634, 1.442695
      %v636 = vpow.pop %v635
      %v637 = vadd.f32 %v636, 1.0
      %v638 = vrcp.pop %v637
      %v639 = vmul.f32 1.0, %v638
      %v640 = vtanh.pop %v633
      %v641 = vmul.f32 %v639, %v540
      %643 = vrot.lane.b32.xlu0 %v640, 64
      %v644 = vpop.permute.xlu0 %643
      %v646 = vmul.f32 %v639, %v644
      %648 = vrot.lane.b32.xlu0 %v646, 32
      %v649 = vpop.permute.xlu0 %648
      %v651 = vadd.f32 %v641, %v649
      %v652 = vtanh.pop %v651
      %654 = vrot.lane.b32.xlu0 %v652, 64
      %v655 = vpop.permute.xlu0 %654
      %v657 = vmul.f32 %v639, %v655
      %v658 = vpack.c.bf16 %v657, %v657
      %v660 = vunpack.c.l.b16 %v658
      %v661 = vpack.c.b16 %v660, %v660
      %662 = vrot.lane.b32.xlu0 %v661, 32
      %v663 = vpop.permute.xlu0 %662
      %s665 = scalar_lea.vmem [#allocation2], 4
      %666 = vst.msk [vmem:[%s665] sm:$0xf] %vm554, %v663
      %s667 = scalar_lea.vmem [#allocation3], 16
      %v668 = vld [vmem:[%s667] sm:$0xff]
      %670 = vrot.lane.b32.xlu0 %v657, 32
      %v671 = vpop.permute.xlu0 %670
      %v672 = vsel %vm378, %v671, 0
      %674 = vmatprep.subr.mxu0 0.0
      %675 = vmatpush1.msra.mxu0 0.0
      %676 = vmatprep.subr.mxu0 0.0
      %677 = vmatpush1.msra.mxu0 0.0
      %678 = vmatprep.subr.mxu0 0.0
      %679 = vmatpush1.msra.mxu0 0.0
      %680 = vmatprep.subr.mxu0 0.0
      %681 = vmatpush1.msra.mxu0 0.0
      %682 = vmatprep.subr.mxu0 0.0
      %683 = vmatpush1.msra.mxu0 0.0
      %684 = vmatprep.subr.mxu0 0.0
      %685 = vmatpush1.msra.mxu0 0.0
      %686 = vmatprep.subr.mxu0 0.0
      %687 = vmatpush1.msra.mxu0 0.0
      %688 = vmatprep.subr.mxu0 0.0
      %689 = vmatpush1.msra.mxu0 0.0
      %690 = vmatprep.subr.mxu0 0.0
      %691 = vmatpush1.msra.mxu0 0.0
      %692 = vmatprep.subr.mxu0 0.0
      %693 = vmatpush1.msra.mxu0 0.0
      %694 = vmatprep.subr.mxu0 0.0
      %695 = vmatpush1.msra.mxu0 0.0
      %696 = vmatprep.subr.mxu0 0.0
      %697 = vmatpush1.msra.mxu0 0.0
      %698 = vmatprep.subr.mxu0 0.0
      %699 = vmatpush1.msra.mxu0 %v441
      %700 = vmatprep.subr.mxu0 0.0
      %701 = vmatpush1.msra.mxu0 %v440
      %702 = vmatprep.subr.mxu0 0.0
      %703 = vmatpush1.msra.mxu0 %v439
      %704 = vmatprep.subr.mxu0 0.0
      %705 = vmatpush1.msra.mxu0 %v438
      %706 = vmatprep.subr.mxu0 0.0
      %707 = vmatpush2.msra.mxu0 0.0
      %708 = vmatprep.subr.mxu0 0.0
      %709 = vmatpush2.msra.mxu0 0.0
      %710 = vmatprep.subr.mxu0 0.0
      %711 = vmatpush2.msra.mxu0 0.0
      %712 = vmatprep.subr.mxu0 0.0
      %713 = vmatpush2.msra.mxu0 0.0
      %714 = vmatprep.subr.mxu0 0.0
      %715 = vmatpush2.msra.mxu0 0.0
      %716 = vmatprep.subr.mxu0 0.0
      %717 = vmatpush2.msra.mxu0 0.0
      %718 = vmatprep.subr.mxu0 0.0
      %719 = vmatpush2.msra.mxu0 0.0
      %720 = vmatprep.subr.mxu0 0.0
      %721 = vmatpush2.msra.mxu0 0.0
      %722 = vmatprep.subr.mxu0 0.0
      %723 = vmatpush2.msra.mxu0 0.0
      %724 = vmatprep.subr.mxu0 0.0
      %725 = vmatpush2.msra.mxu0 0.0
      %726 = vmatprep.subr.mxu0 0.0
      %727 = vmatpush2.msra.mxu0 0.0
      %728 = vmatprep.subr.mxu0 0.0
      %729 = vmatpush2.msra.mxu0 0.0
      %730 = vmatprep.subr.mxu0 0.0
      %731 = vmatpush2.msra.mxu0 0.0
      %732 = vmatprep.subr.mxu0 0.0
      %733 = vmatpush2.msra.mxu0 0.0
      %734 = vmatprep.subr.mxu0 0.0
      %735 = vmatpush2.msra.mxu0 0.0
      %736 = vmatprep.subr.mxu0 0.0
      %737 = vmatpush2.msra.mxu0 0.0
      %738 = vmatprep.mubr.f32.mxu0 0.0
      %739 = vmatmul.mubr.f32.gmra.mxu0 %v672
      %v740 = vpop.f32.mrf.mxu0
      %v741 = vadd.f32 0.0, %v740
      %v742 = vpop.f32.mrf.mxu0
      %743 = vdwg.mxu0
      %v744 = vadd.f32 %v668, %v741
      %v745 = vxor.u32 %v744, 2147483648
      %v746 = vmul.f32 %v745, 1.442695
      %v747 = vpow.pop %v746
      %v748 = vadd.f32 %v747, 1.0
      %v749 = vrcp.pop %v748
      %v750 = vmul.f32 1.0, %v749
      %v751 = vtanh.pop %v744
      %v752 = vmul.f32 %v750, %v651
      %754 = vrot.lane.b32.xlu0 %v751, 64
      %v755 = vpop.permute.xlu0 %754
      %v757 = vmul.f32 %v750, %v755
      %759 = vrot.lane.b32.xlu0 %v757, 32
      %v760 = vpop.permute.xlu0 %759
      %v762 = vadd.f32 %v752, %v760
      %v763 = vtanh.pop %v762
      %765 = vrot.lane.b32.xlu0 %v763, 64
      %v766 = vpop.permute.xlu0 %765
      %v768 = vmul.f32 %v750, %v766
      %v769 = vpack.c.bf16 %v768, %v768
      %v771 = vunpack.c.l.b16 %v769
      %v772 = vpack.c.b16 %v771, %v771
      %773 = vrot.lane.b32.xlu0 %v772, 32
      %v774 = vpop.permute.xlu0 %773
      %s776 = scalar_lea.vmem [#allocation2], 8
      %777 = vst.msk [vmem:[%s776] sm:$0xf] %vm554, %v774
      %s778 = scalar_lea.vmem [#allocation3], 24
      %v779 = vld [vmem:[%s778] sm:$0xff]
      %781 = vrot.lane.b32.xlu0 %v768, 32
      %v782 = vpop.permute.xlu0 %781
      %v783 = vsel %vm378, %v782, 0
      %785 = vmatprep.subr.mxu0 0.0
      %786 = vmatpush1.msra.mxu0 0.0
      %787 = vmatprep.subr.mxu0 0.0
      %788 = vmatpush1.msra.mxu0 0.0
      %789 = vmatprep.subr.mxu0 0.0
      %790 = vmatpush1.msra.mxu0 0.0
      %791 = vmatprep.subr.mxu0 0.0
      %792 = vmatpush1.msra.mxu0 0.0
      %793 = vmatprep.subr.mxu0 0.0
      %794 = vmatpush1.msra.mxu0 0.0
      %795 = vmatprep.subr.mxu0 0.0
      %796 = vmatpush1.msra.mxu0 0.0
      %797 = vmatprep.subr.mxu0 0.0
      %798 = vmatpush1.msra.mxu0 0.0
      %799 = vmatprep.subr.mxu0 0.0
      %800 = vmatpush1.msra.mxu0 0.0
      %801 = vmatprep.subr.mxu0 0.0
      %802 = vmatpush1.msra.mxu0 0.0
      %803 = vmatprep.subr.mxu0 0.0
      %804 = vmatpush1.msra.mxu0 0.0
      %805 = vmatprep.subr.mxu0 0.0
      %806 = vmatpush1.msra.mxu0 0.0
      %807 = vmatprep.subr.mxu0 0.0
      %808 = vmatpush1.msra.mxu0 0.0
      %809 = vmatprep.subr.mxu0 0.0
      %810 = vmatpush1.msra.mxu0 %v441
      %811 = vmatprep.subr.mxu0 0.0
      %812 = vmatpush1.msra.mxu0 %v440
      %813 = vmatprep.subr.mxu0 0.0
      %814 = vmatpush1.msra.mxu0 %v439
      %815 = vmatprep.subr.mxu0 0.0
      %816 = vmatpush1.msra.mxu0 %v438
      %817 = vmatprep.subr.mxu0 0.0
      %818 = vmatpush2.msra.mxu0 0.0
      %819 = vmatprep.subr.mxu0 0.0
      %820 = vmatpush2.msra.mxu0 0.0
      %821 = vmatprep.subr.mxu0 0.0
      %822 = vmatpush2.msra.mxu0 0.0
      %823 = vmatprep.subr.mxu0 0.0
      %824 = vmatpush2.msra.mxu0 0.0
      %825 = vmatprep.subr.mxu0 0.0
      %826 = vmatpush2.msra.mxu0 0.0
      %827 = vmatprep.subr.mxu0 0.0
      %828 = vmatpush2.msra.mxu0 0.0
      %829 = vmatprep.subr.mxu0 0.0
      %830 = vmatpush2.msra.mxu0 0.0
      %831 = vmatprep.subr.mxu0 0.0
      %832 = vmatpush2.msra.mxu0 0.0
      %833 = vmatprep.subr.mxu0 0.0
      %834 = vmatpush2.msra.mxu0 0.0
      %835 = vmatprep.subr.mxu0 0.0
      %836 = vmatpush2.msra.mxu0 0.0
      %837 = vmatprep.subr.mxu0 0.0
      %838 = vmatpush2.msra.mxu0 0.0
      %839 = vmatprep.subr.mxu0 0.0
      %840 = vmatpush2.msra.mxu0 0.0
      %841 = vmatprep.subr.mxu0 0.0
      %842 = vmatpush2.msra.mxu0 0.0
      %843 = vmatprep.subr.mxu0 0.0
      %844 = vmatpush2.msra.mxu0 0.0
      %845 = vmatprep.subr.mxu0 0.0
      %846 = vmatpush2.msra.mxu0 0.0
      %847 = vmatprep.subr.mxu0 0.0
      %848 = vmatpush2.msra.mxu0 0.0
      %849 = vmatprep.mubr.f32.mxu0 0.0
      %850 = vmatmul.mubr.f32.gmra.mxu0 %v783
      %v851 = vpop.f32.mrf.mxu0
      %v852 = vadd.f32 0.0, %v851
      %v853 = vpop.f32.mrf.mxu0
      %854 = vdwg.mxu0
      %v855 = vadd.f32 %v779, %v852
      %v856 = vxor.u32 %v855, 2147483648
      %v857 = vmul.f32 %v856, 1.442695
      %v858 = vpow.pop %v857
      %v859 = vadd.f32 %v858, 1.0
      %v860 = vrcp.pop %v859
      %v861 = vmul.f32 1.0, %v860
      %v862 = vtanh.pop %v855
      %v863 = vmul.f32 %v861, %v762
      %865 = vrot.lane.b32.xlu0 %v862, 64
      %v866 = vpop.permute.xlu0 %865
      %v868 = vmul.f32 %v861, %v866
      %870 = vrot.lane.b32.xlu0 %v868, 32
      %v871 = vpop.permute.xlu0 %870
      %v873 = vadd.f32 %v863, %v871
      %v874 = vtanh.pop %v873
      %876 = vrot.lane.b32.xlu0 %v874, 64
      %v877 = vpop.permute.xlu0 %876
      %v879 = vmul.f32 %v861, %v877
      %v880 = vpack.c.bf16 %v879, %v879
      %v882 = vunpack.c.l.b16 %v880
      %v883 = vpack.c.b16 %v882, %v882
      %884 = vrot.lane.b32.xlu0 %v883, 32
      %v885 = vpop.permute.xlu0 %884
      %s887 = scalar_lea.vmem [#allocation2], 12
      %888 = vst.msk [vmem:[%s887] sm:$0xf] %vm554, %v885
      %890 = vrot.lane.b32.xlu0 %v879, 32
      %v891 = vpop.permute.xlu0 %890
      %893 = vst.msk [vmem:[%s8] sm:$0xff] %vm378, %v891
      %895 = vrot.lane.b32.xlu0 %v873, 96
      %v896 = vpop.permute.xlu0 %895
      %898 = vst.msk [vmem:[%s9] sm:$0xff] %vm378, %v896
      %v899 = vld [vmem:[#allocation2] sm:$0xf]
      %v900 = vld [vmem:[#allocation2 + $0x4] sm:$0xf]
      %v901 = vld [vmem:[#allocation2 + $0x8] sm:$0xf]
      %v902 = vld [vmem:[#allocation2 + $0xc] sm:$0xf]
      %v903 = vld [vmem:[%s4] sm:$0xf]
      %v904 = vld [vmem:[%s4 + $0x4] sm:$0xf]
      %v905 = vld [vmem:[%s4 + $0x8] sm:$0xf]
      %v906 = vld [vmem:[%s4 + $0xc] sm:$0xf]
      %v907 = vld [vmem:[%s6] sm:$0x1]
      %v909 = vlaneseq
      %v910 = vshrl.u32 %v909, 7
      %v911 = vsub.s32 0, %v910
      %v912 = vrot.slane %v907, %v911
      %v918 = vunpack.c.l.b16 %v899
      %v919 = vunpack.c.l.b16 %v900
      %v920 = vunpack.c.l.b16 %v901
      %v921 = vunpack.c.l.b16 %v902
      %v922 = vpack.c.b16 %v919, %v918
      %v923 = vpack.c.b16 %v921, %v920
      %v928 = vunpack.c.l.b16 %v903
      %v929 = vunpack.c.l.b16 %v904
      %v930 = vunpack.c.l.b16 %v905
      %v931 = vunpack.c.l.b16 %v906
      %v932 = vpack.c.b16 %v929, %v928
      %v933 = vpack.c.b16 %v931, %v930
      %v937 = vsel %vm378, %v922, 0
      %v940 = vsel %vm378, %v923, 0
      %942 = vmatprep.subr.bf16.mxu0 0
      %943 = vmatpush1.bf16.msra.mxu0 0
      %944 = vmatprep.subr.bf16.mxu0 0
      %945 = vmatpush1.bf16.msra.mxu0 0
      %946 = vmatprep.subr.bf16.mxu0 0
      %947 = vmatpush1.bf16.msra.mxu0 0
      %948 = vmatprep.subr.bf16.mxu0 0
      %949 = vmatpush1.bf16.msra.mxu0 0
      %950 = vmatprep.subr.bf16.mxu0 0
      %951 = vmatpush1.bf16.msra.mxu0 0
      %952 = vmatprep.subr.bf16.mxu0 0
      %953 = vmatpush1.bf16.msra.mxu0 0
      %954 = vmatprep.subr.bf16.mxu0 0
      %955 = vmatpush1.bf16.msra.mxu0 %v933
      %956 = vmatprep.subr.bf16.mxu0 0
      %957 = vmatpush1.bf16.msra.mxu0 %v932
      %958 = vmatprep.subr.bf16.mxu0 0
      %959 = vmatpush2.bf16.msra.mxu0 0
      %960 = vmatprep.subr.bf16.mxu0 0
      %961 = vmatpush2.bf16.msra.mxu0 0
      %962 = vmatprep.subr.bf16.mxu0 0
      %963 = vmatpush2.bf16.msra.mxu0 0
      %964 = vmatprep.subr.bf16.mxu0 0
      %965 = vmatpush2.bf16.msra.mxu0 0
      %966 = vmatprep.subr.bf16.mxu0 0
      %967 = vmatpush2.bf16.msra.mxu0 0
      %968 = vmatprep.subr.bf16.mxu0 0
      %969 = vmatpush2.bf16.msra.mxu0 0
      %970 = vmatprep.subr.bf16.mxu0 0
      %971 = vmatpush2.bf16.msra.mxu0 0
      %972 = vmatprep.subr.bf16.mxu0 0
      %973 = vmatpush2.bf16.msra.mxu0 0
      %974 = vmatprep.mubr.bf16.mxu0 0
      %975 = vmatmul.mubr.bf16.gmra.mxu0 %v937
      %v976 = vpop.f32.mrf.mxu0
      %v977 = vadd.f32 %v912, %v976
      %v978 = vpop.f32.mrf.mxu0
      %v979 = vpop.f32.mrf.mxu0
      %v980 = vadd.f32 %v912, %v979
      %v981 = vpop.f32.mrf.mxu0
      %982 = vmatprep.mubr.bf16.mxu0 0
      %983 = vmatmul.mubr.bf16.gmra.mxu0 %v940
      %v984 = vpop.f32.mrf.mxu0
      %v985 = vadd.f32 %v912, %v984
      %v986 = vpop.f32.mrf.mxu0
      %v987 = vpop.f32.mrf.mxu0
      %v988 = vadd.f32 %v912, %v987
      %v989 = vpop.f32.mrf.mxu0
      %990 = vdwg.mxu0
      %991 = vst [vmem:[#allocation3] sm:$0xff] %v977
      %992 = vst [vmem:[#allocation3 + $0x8] sm:$0xff] %v980
      %993 = vst [vmem:[#allocation3 + $0x10] sm:$0xff] %v985
      %994 = vst [vmem:[#allocation3 + $0x18] sm:$0xff] %v988
      %v995 = vld [vmem:[%s5] sm:$0xff]
      %v996 = vld [vmem:[%s5 + $0x8] sm:$0xff]
      %v997 = vld [vmem:[%s5 + $0x10] sm:$0xff]
      %v998 = vld [vmem:[%s5 + $0x18] sm:$0xff]
      %s999 = scalar_lea.vmem %s8, 8
      %v1000 = vld [vmem:[%s999] sm:$0xff]
      %s1001 = scalar_lea.vmem %s9, 8
      %v1002 = vld [vmem:[%s1001] sm:$0xff]
      %v1003 = vld [vmem:[#allocation3] sm:$0xff]
      %v1005 = vsel %vm378, %v1000, 0
      %1007 = vmatprep.subr.mxu0 0.0
      %1008 = vmatpush1.msra.mxu0 0.0
      %1009 = vmatprep.subr.mxu0 0.0
      %1010 = vmatpush1.msra.mxu0 0.0
      %1011 = vmatprep.subr.mxu0 0.0
      %1012 = vmatpush1.msra.mxu0 0.0
      %1013 = vmatprep.subr.mxu0 0.0
      %1014 = vmatpush1.msra.mxu0 0.0
      %1015 = vmatprep.subr.mxu0 0.0
      %1016 = vmatpush1.msra.mxu0 0.0
      %1017 = vmatprep.subr.mxu0 0.0
      %1018 = vmatpush1.msra.mxu0 0.0
      %1019 = vmatprep.subr.mxu0 0.0
      %1020 = vmatpush1.msra.mxu0 0.0
      %1021 = vmatprep.subr.mxu0 0.0
      %1022 = vmatpush1.msra.mxu0 0.0
      %1023 = vmatprep.subr.mxu0 0.0
      %1024 = vmatpush1.msra.mxu0 0.0
      %1025 = vmatprep.subr.mxu0 0.0
      %1026 = vmatpush1.msra.mxu0 0.0
      %1027 = vmatprep.subr.mxu0 0.0
      %1028 = vmatpush1.msra.mxu0 0.0
      %1029 = vmatprep.subr.mxu0 0.0
      %1030 = vmatpush1.msra.mxu0 0.0
      %1031 = vmatprep.subr.mxu0 0.0
      %1032 = vmatpush1.msra.mxu0 %v998
      %1033 = vmatprep.subr.mxu0 0.0
      %1034 = vmatpush1.msra.mxu0 %v997
      %1035 = vmatprep.subr.mxu0 0.0
      %1036 = vmatpush1.msra.mxu0 %v996
      %1037 = vmatprep.subr.mxu0 0.0
      %1038 = vmatpush1.msra.mxu0 %v995
      %1039 = vmatprep.subr.mxu0 0.0
      %1040 = vmatpush2.msra.mxu0 0.0
      %1041 = vmatprep.subr.mxu0 0.0
      %1042 = vmatpush2.msra.mxu0 0.0
      %1043 = vmatprep.subr.mxu0 0.0
      %1044 = vmatpush2.msra.mxu0 0.0
      %1045 = vmatprep.subr.mxu0 0.0
      %1046 = vmatpush2.msra.mxu0 0.0
      %1047 = vmatprep.subr.mxu0 0.0
      %1048 = vmatpush2.msra.mxu0 0.0
      %1049 = vmatprep.subr.mxu0 0.0
      %1050 = vmatpush2.msra.mxu0 0.0
      %1051 = vmatprep.subr.mxu0 0.0
      %1052 = vmatpush2.msra.mxu0 0.0
      %1053 = vmatprep.subr.mxu0 0.0
      %1054 = vmatpush2.msra.mxu0 0.0
      %1055 = vmatprep.subr.mxu0 0.0
      %1056 = vmatpush2.msra.mxu0 0.0
      %1057 = vmatprep.subr.mxu0 0.0
      %1058 = vmatpush2.msra.mxu0 0.0
      %1059 = vmatprep.subr.mxu0 0.0
      %1060 = vmatpush2.msra.mxu0 0.0
      %1061 = vmatprep.subr.mxu0 0.0
      %1062 = vmatpush2.msra.mxu0 0.0
      %1063 = vmatprep.subr.mxu0 0.0
      %1064 = vmatpush2.msra.mxu0 0.0
      %1065 = vmatprep.subr.mxu0 0.0
      %1066 = vmatpush2.msra.mxu0 0.0
      %1067 = vmatprep.subr.mxu0 0.0
      %1068 = vmatpush2.msra.mxu0 0.0
      %1069 = vmatprep.subr.mxu0 0.0
      %1070 = vmatpush2.msra.mxu0 0.0
      %1071 = vmatprep.mubr.f32.mxu0 0.0
      %1072 = vmatmul.mubr.f32.gmra.mxu0 %v1005
      %v1073 = vpop.f32.mrf.mxu0
      %v1074 = vadd.f32 0.0, %v1073
      %v1075 = vpop.f32.mrf.mxu0
      %1076 = vdwg.mxu0
      %v1077 = vadd.f32 %v1003, %v1074
      %v1078 = vxor.u32 %v1077, 2147483648
      %v1079 = vmul.f32 %v1078, 1.442695
      %v1080 = vpow.pop %v1079
      %v1081 = vadd.f32 %v1080, 1.0
      %v1082 = vrcp.pop %v1081
      %v1083 = vmul.f32 1.0, %v1082
      %v1084 = vtanh.pop %v1077
      %1086 = vrot.lane.b32.xlu0 %v1002, 32
      %v1087 = vpop.permute.xlu0 %1086
      %v1089 = vmul.f32 %v1083, %v1087
      %1091 = vrot.lane.b32.xlu0 %v1084, 64
      %v1092 = vpop.permute.xlu0 %1091
      %v1094 = vmul.f32 %v1083, %v1092
      %1096 = vrot.lane.b32.xlu0 %v1094, 32
      %v1097 = vpop.permute.xlu0 %1096
      %v1099 = vadd.f32 %v1089, %v1097
      %v1100 = vtanh.pop %v1099
      %1102 = vrot.lane.b32.xlu0 %v1100, 64
      %v1103 = vpop.permute.xlu0 %1102
      %v1105 = vmul.f32 %v1083, %v1103
      %1107 = vrot.lane.b32.xlu0 %v1105, 32
      %v1108 = vpop.permute.xlu0 %1107
      %1110 = vst.msk [vmem:[%s329] sm:$0xff] %vm378, %v1108
      %v1111 = vld [vmem:[%s556] sm:$0xff]
      %v1112 = vsel %vm378, %v1108, 0
      %1114 = vmatprep.subr.mxu0 0.0
      %1115 = vmatpush1.msra.mxu0 0.0
      %1116 = vmatprep.subr.mxu0 0.0
      %1117 = vmatpush1.msra.mxu0 0.0
      %1118 = vmatprep.subr.mxu0 0.0
      %1119 = vmatpush1.msra.mxu0 0.0
      %1120 = vmatprep.subr.mxu0 0.0
      %1121 = vmatpush1.msra.mxu0 0.0
      %1122 = vmatprep.subr.mxu0 0.0
      %1123 = vmatpush1.msra.mxu0 0.0
      %1124 = vmatprep.subr.mxu0 0.0
      %1125 = vmatpush1.msra.mxu0 0.0
      %1126 = vmatprep.subr.mxu0 0.0
      %1127 = vmatpush1.msra.mxu0 0.0
      %1128 = vmatprep.subr.mxu0 0.0
      %1129 = vmatpush1.msra.mxu0 0.0
      %1130 = vmatprep.subr.mxu0 0.0
      %1131 = vmatpush1.msra.mxu0 0.0
      %1132 = vmatprep.subr.mxu0 0.0
      %1133 = vmatpush1.msra.mxu0 0.0
      %1134 = vmatprep.subr.mxu0 0.0
      %1135 = vmatpush1.msra.mxu0 0.0
      %1136 = vmatprep.subr.mxu0 0.0
      %1137 = vmatpush1.msra.mxu0 0.0
      %1138 = vmatprep.subr.mxu0 0.0
      %1139 = vmatpush1.msra.mxu0 %v998
      %1140 = vmatprep.subr.mxu0 0.0
      %1141 = vmatpush1.msra.mxu0 %v997
      %1142 = vmatprep.subr.mxu0 0.0
      %1143 = vmatpush1.msra.mxu0 %v996
      %1144 = vmatprep.subr.mxu0 0.0
      %1145 = vmatpush1.msra.mxu0 %v995
      %1146 = vmatprep.subr.mxu0 0.0
      %1147 = vmatpush2.msra.mxu0 0.0
      %1148 = vmatprep.subr.mxu0 0.0
      %1149 = vmatpush2.msra.mxu0 0.0
      %1150 = vmatprep.subr.mxu0 0.0
      %1151 = vmatpush2.msra.mxu0 0.0
      %1152 = vmatprep.subr.mxu0 0.0
      %1153 = vmatpush2.msra.mxu0 0.0
      %1154 = vmatprep.subr.mxu0 0.0
      %1155 = vmatpush2.msra.mxu0 0.0
      %1156 = vmatprep.subr.mxu0 0.0
      %1157 = vmatpush2.msra.mxu0 0.0
      %1158 = vmatprep.subr.mxu0 0.0
      %1159 = vmatpush2.msra.mxu0 0.0
      %1160 = vmatprep.subr.mxu0 0.0
      %1161 = vmatpush2.msra.mxu0 0.0
      %1162 = vmatprep.subr.mxu0 0.0
      %1163 = vmatpush2.msra.mxu0 0.0
      %1164 = vmatprep.subr.mxu0 0.0
      %1165 = vmatpush2.msra.mxu0 0.0
      %1166 = vmatprep.subr.mxu0 0.0
      %1167 = vmatpush2.msra.mxu0 0.0
      %1168 = vmatprep.subr.mxu0 0.0
      %1169 = vmatpush2.msra.mxu0 0.0
      %1170 = vmatprep.subr.mxu0 0.0
      %1171 = vmatpush2.msra.mxu0 0.0
      %1172 = vmatprep.subr.mxu0 0.0
      %1173 = vmatpush2.msra.mxu0 0.0
      %1174 = vmatprep.subr.mxu0 0.0
      %1175 = vmatpush2.msra.mxu0 0.0
      %1176 = vmatprep.subr.mxu0 0.0
      %1177 = vmatpush2.msra.mxu0 0.0
      %1178 = vmatprep.mubr.f32.mxu0 0.0
      %1179 = vmatmul.mubr.f32.gmra.mxu0 %v1112
      %v1180 = vpop.f32.mrf.mxu0
      %v1181 = vadd.f32 0.0, %v1180
      %v1182 = vpop.f32.mrf.mxu0
      %1183 = vdwg.mxu0
      %v1184 = vadd.f32 %v1111, %v1181
      %v1185 = vxor.u32 %v1184, 2147483648
      %v1186 = vmul.f32 %v1185, 1.442695
      %v1187 = vpow.pop %v1186
      %v1188 = vadd.f32 %v1187, 1.0
      %v1189 = vrcp.pop %v1188
      %v1190 = vmul.f32 1.0, %v1189
      %v1191 = vtanh.pop %v1184
      %v1192 = vmul.f32 %v1190, %v1099
      %1194 = vrot.lane.b32.xlu0 %v1191, 64
      %v1195 = vpop.permute.xlu0 %1194
      %v1197 = vmul.f32 %v1190, %v1195
      %1199 = vrot.lane.b32.xlu0 %v1197, 32
      %v1200 = vpop.permute.xlu0 %1199
      %v1202 = vadd.f32 %v1192, %v1200
      %v1203 = vtanh.pop %v1202
      %1205 = vrot.lane.b32.xlu0 %v1203, 64
      %v1206 = vpop.permute.xlu0 %1205
      %v1208 = vmul.f32 %v1190, %v1206
      %1210 = vrot.lane.b32.xlu0 %v1208, 32
      %v1211 = vpop.permute.xlu0 %1210
      %s1213 = scalar_lea.vmem %s329, 8
      %1214 = vst.msk [vmem:[%s1213] sm:$0xff] %vm378, %v1211
      %v1215 = vld [vmem:[%s667] sm:$0xff]
      %v1216 = vsel %vm378, %v1211, 0
      %1218 = vmatprep.subr.mxu0 0.0
      %1219 = vmatpush1.msra.mxu0 0.0
      %1220 = vmatprep.subr.mxu0 0.0
      %1221 = vmatpush1.msra.mxu0 0.0
      %1222 = vmatprep.subr.mxu0 0.0
      %1223 = vmatpush1.msra.mxu0 0.0
      %1224 = vmatprep.subr.mxu0 0.0
      %1225 = vmatpush1.msra.mxu0 0.0
      %1226 = vmatprep.subr.mxu0 0.0
      %1227 = vmatpush1.msra.mxu0 0.0
      %1228 = vmatprep.subr.mxu0 0.0
      %1229 = vmatpush1.msra.mxu0 0.0
      %1230 = vmatprep.subr.mxu0 0.0
      %1231 = vmatpush1.msra.mxu0 0.0
      %1232 = vmatprep.subr.mxu0 0.0
      %1233 = vmatpush1.msra.mxu0 0.0
      %1234 = vmatprep.subr.mxu0 0.0
      %1235 = vmatpush1.msra.mxu0 0.0
      %1236 = vmatprep.subr.mxu0 0.0
      %1237 = vmatpush1.msra.mxu0 0.0
      %1238 = vmatprep.subr.mxu0 0.0
      %1239 = vmatpush1.msra.mxu0 0.0
      %1240 = vmatprep.subr.mxu0 0.0
      %1241 = vmatpush1.msra.mxu0 0.0
      %1242 = vmatprep.subr.mxu0 0.0
      %1243 = vmatpush1.msra.mxu0 %v998
      %1244 = vmatprep.subr.mxu0 0.0
      %1245 = vmatpush1.msra.mxu0 %v997
      %1246 = vmatprep.subr.mxu0 0.0
      %1247 = vmatpush1.msra.mxu0 %v996
      %1248 = vmatprep.subr.mxu0 0.0
      %1249 = vmatpush1.msra.mxu0 %v995
      %1250 = vmatprep.subr.mxu0 0.0
      %1251 = vmatpush2.msra.mxu0 0.0
      %1252 = vmatprep.subr.mxu0 0.0
      %1253 = vmatpush2.msra.mxu0 0.0
      %1254 = vmatprep.subr.mxu0 0.0
      %1255 = vmatpush2.msra.mxu0 0.0
      %1256 = vmatprep.subr.mxu0 0.0
      %1257 = vmatpush2.msra.mxu0 0.0
      %1258 = vmatprep.subr.mxu0 0.0
      %1259 = vmatpush2.msra.mxu0 0.0
      %1260 = vmatprep.subr.mxu0 0.0
      %1261 = vmatpush2.msra.mxu0 0.0
      %1262 = vmatprep.subr.mxu0 0.0
      %1263 = vmatpush2.msra.mxu0 0.0
      %1264 = vmatprep.subr.mxu0 0.0
      %1265 = vmatpush2.msra.mxu0 0.0
      %1266 = vmatprep.subr.mxu0 0.0
      %1267 = vmatpush2.msra.mxu0 0.0
      %1268 = vmatprep.subr.mxu0 0.0
      %1269 = vmatpush2.msra.mxu0 0.0
      %1270 = vmatprep.subr.mxu0 0.0
      %1271 = vmatpush2.msra.mxu0 0.0
      %1272 = vmatprep.subr.mxu0 0.0
      %1273 = vmatpush2.msra.mxu0 0.0
      %1274 = vmatprep.subr.mxu0 0.0
      %1275 = vmatpush2.msra.mxu0 0.0
      %1276 = vmatprep.subr.mxu0 0.0
      %1277 = vmatpush2.msra.mxu0 0.0
      %1278 = vmatprep.subr.mxu0 0.0
      %1279 = vmatpush2.msra.mxu0 0.0
      %1280 = vmatprep.subr.mxu0 0.0
      %1281 = vmatpush2.msra.mxu0 0.0
      %1282 = vmatprep.mubr.f32.mxu0 0.0
      %1283 = vmatmul.mubr.f32.gmra.mxu0 %v1216
      %v1284 = vpop.f32.mrf.mxu0
      %v1285 = vadd.f32 0.0, %v1284
      %v1286 = vpop.f32.mrf.mxu0
      %1287 = vdwg.mxu0
      %v1288 = vadd.f32 %v1215, %v1285
      %v1289 = vxor.u32 %v1288, 2147483648
      %v1290 = vmul.f32 %v1289, 1.442695
      %v1291 = vpow.pop %v1290
      %v1292 = vadd.f32 %v1291, 1.0
      %v1293 = vrcp.pop %v1292
      %v1294 = vmul.f32 1.0, %v1293
      %v1295 = vtanh.pop %v1288
      %v1296 = vmul.f32 %v1294, %v1202
      %1298 = vrot.lane.b32.xlu0 %v1295, 64
      %v1299 = vpop.permute.xlu0 %1298
      %v1301 = vmul.f32 %v1294, %v1299
      %1303 = vrot.lane.b32.xlu0 %v1301, 32
      %v1304 = vpop.permute.xlu0 %1303
      %v1306 = vadd.f32 %v1296, %v1304
      %v1307 = vtanh.pop %v1306
      %1309 = vrot.lane.b32.xlu0 %v1307, 64
      %v1310 = vpop.permute.xlu0 %1309
      %v1312 = vmul.f32 %v1294, %v1310
      %1314 = vrot.lane.b32.xlu0 %v1312, 32
      %v1315 = vpop.permute.xlu0 %1314
      %s1317 = scalar_lea.vmem %s329, 16
      %1318 = vst.msk [vmem:[%s1317] sm:$0xff] %vm378, %v1315
      %v1319 = vld [vmem:[%s778] sm:$0xff]
      %v1320 = vsel %vm378, %v1315, 0
      %1322 = vmatprep.subr.mxu0 0.0
      %1323 = vmatpush1.msra.mxu0 0.0
      %1324 = vmatprep.subr.mxu0 0.0
      %1325 = vmatpush1.msra.mxu0 0.0
      %1326 = vmatprep.subr.mxu0 0.0
      %1327 = vmatpush1.msra.mxu0 0.0
      %1328 = vmatprep.subr.mxu0 0.0
      %1329 = vmatpush1.msra.mxu0 0.0
      %1330 = vmatprep.subr.mxu0 0.0
      %1331 = vmatpush1.msra.mxu0 0.0
      %1332 = vmatprep.subr.mxu0 0.0
      %1333 = vmatpush1.msra.mxu0 0.0
      %1334 = vmatprep.subr.mxu0 0.0
      %1335 = vmatpush1.msra.mxu0 0.0
      %1336 = vmatprep.subr.mxu0 0.0
      %1337 = vmatpush1.msra.mxu0 0.0
      %1338 = vmatprep.subr.mxu0 0.0
      %1339 = vmatpush1.msra.mxu0 0.0
      %1340 = vmatprep.subr.mxu0 0.0
      %1341 = vmatpush1.msra.mxu0 0.0
      %1342 = vmatprep.subr.mxu0 0.0
      %1343 = vmatpush1.msra.mxu0 0.0
      %1344 = vmatprep.subr.mxu0 0.0
      %1345 = vmatpush1.msra.mxu0 0.0
      %1346 = vmatprep.subr.mxu0 0.0
      %1347 = vmatpush1.msra.mxu0 %v998
      %1348 = vmatprep.subr.mxu0 0.0
      %1349 = vmatpush1.msra.mxu0 %v997
      %1350 = vmatprep.subr.mxu0 0.0
      %1351 = vmatpush1.msra.mxu0 %v996
      %1352 = vmatprep.subr.mxu0 0.0
      %1353 = vmatpush1.msra.mxu0 %v995
      %1354 = vmatprep.subr.mxu0 0.0
      %1355 = vmatpush2.msra.mxu0 0.0
      %1356 = vmatprep.subr.mxu0 0.0
      %1357 = vmatpush2.msra.mxu0 0.0
      %1358 = vmatprep.subr.mxu0 0.0
      %1359 = vmatpush2.msra.mxu0 0.0
      %1360 = vmatprep.subr.mxu0 0.0
      %1361 = vmatpush2.msra.mxu0 0.0
      %1362 = vmatprep.subr.mxu0 0.0
      %1363 = vmatpush2.msra.mxu0 0.0
      %1364 = vmatprep.subr.mxu0 0.0
      %1365 = vmatpush2.msra.mxu0 0.0
      %1366 = vmatprep.subr.mxu0 0.0
      %1367 = vmatpush2.msra.mxu0 0.0
      %1368 = vmatprep.subr.mxu0 0.0
      %1369 = vmatpush2.msra.mxu0 0.0
      %1370 = vmatprep.subr.mxu0 0.0
      %1371 = vmatpush2.msra.mxu0 0.0
      %1372 = vmatprep.subr.mxu0 0.0
      %1373 = vmatpush2.msra.mxu0 0.0
      %1374 = vmatprep.subr.mxu0 0.0
      %1375 = vmatpush2.msra.mxu0 0.0
      %1376 = vmatprep.subr.mxu0 0.0
      %1377 = vmatpush2.msra.mxu0 0.0
      %1378 = vmatprep.subr.mxu0 0.0
      %1379 = vmatpush2.msra.mxu0 0.0
      %1380 = vmatprep.subr.mxu0 0.0
      %1381 = vmatpush2.msra.mxu0 0.0
      %1382 = vmatprep.subr.mxu0 0.0
      %1383 = vmatpush2.msra.mxu0 0.0
      %1384 = vmatprep.subr.mxu0 0.0
      %1385 = vmatpush2.msra.mxu0 0.0
      %1386 = vmatprep.mubr.f32.mxu0 0.0
      %1387 = vmatmul.mubr.f32.gmra.mxu0 %v1320
      %v1388 = vpop.f32.mrf.mxu0
      %v1389 = vadd.f32 0.0, %v1388
      %v1390 = vpop.f32.mrf.mxu0
      %1391 = vdwg.mxu0
      %v1392 = vadd.f32 %v1319, %v1389
      %v1393 = vxor.u32 %v1392, 2147483648
      %v1394 = vmul.f32 %v1393, 1.442695
      %v1395 = vpow.pop %v1394
      %v1396 = vadd.f32 %v1395, 1.0
      %v1397 = vrcp.pop %v1396
      %v1398 = vmul.f32 1.0, %v1397
      %v1399 = vtanh.pop %v1392
      %v1400 = vmul.f32 %v1398, %v1306
      %1402 = vrot.lane.b32.xlu0 %v1399, 64
      %v1403 = vpop.permute.xlu0 %1402
      %v1405 = vmul.f32 %v1398, %v1403
      %1407 = vrot.lane.b32.xlu0 %v1405, 32
      %v1408 = vpop.permute.xlu0 %1407
      %v1410 = vadd.f32 %v1400, %v1408
      %v1411 = vtanh.pop %v1410
      %1413 = vrot.lane.b32.xlu0 %v1411, 64
      %v1414 = vpop.permute.xlu0 %1413
      %v1416 = vmul.f32 %v1398, %v1414
      %1418 = vrot.lane.b32.xlu0 %v1416, 32
      %v1419 = vpop.permute.xlu0 %1418
      %s1421 = scalar_lea.vmem %s329, 24
      %1422 = vst.msk [vmem:[%s1421] sm:$0xff] %vm378, %v1419
      %1423 = vst.msk [vmem:[%s999] sm:$0xff] %vm378, %v1419
      %1425 = vrot.lane.b32.xlu0 %v1410, 96
      %v1426 = vpop.permute.xlu0 %1425
      %1428 = vst.msk [vmem:[%s1001] sm:$0xff] %vm378, %v1426
      %s1429 = smul.u32 4, %s21
      %p1430 = scmp.lt.s32.totalorder %s1429, 7
      %s1431 = scalar_select %p1430, %s1429, 7
      %s1432 = smul.addr %s1431, 8
      %s1433 = scalar_lea.vmem %s7, %s1432
      // Predicated region
      $region53: #{encoder_forward.1} parent=47 // pred_check
        %p1434 = pneg %p191
      $region54: #{encoder_forward.1} parent=47 // pred_check_branch
        %1436 = sbr.rel (%p1434) target = $region56
      $region55: #{encoder_forward.1} parent=47 // pred_region
        %s1437 = smul.u32 4, %s21
      $region56: #{encoder_forward.1} parent=47 // pred_fallthru
        _
      // Predicated region
      $region57: #{encoder_forward.1} parent=47 // pred_check
        %p1438 = pneg %p212
      $region58: #{encoder_forward.1} parent=47 // pred_check_branch
        %1440 = sbr.rel (%p1438) target = $region60
      $region59: #{encoder_forward.1} parent=47 // pred_region
        _
      $region60: #{encoder_forward.1} parent=47 // pred_fallthru
        _
      // Predicated region
      $region61: #{encoder_forward.1} parent=47 // pred_check
        %p1441 = pneg %p233
      $region62: #{encoder_forward.1} parent=47 // pred_check_branch
        %1443 = sbr.rel (%p1441) target = $region64
      $region63: #{encoder_forward.1} parent=47 // pred_region
        _
      $region64: #{encoder_forward.1} parent=47 // pred_fallthru
        _
      // Predicated region
      $region65: #{encoder_forward.1} parent=47 // pred_check
        %p1444 = pneg %p212
      $region66: #{encoder_forward.1} parent=47 // pred_check_branch
        %1446 = sbr.rel (%p1444) target = $region68
      $region67: #{encoder_forward.1} parent=47 // pred_region
        _
      $region68: #{encoder_forward.1} parent=47 // pred_fallthru
        _
      // Predicated region
      $region69: #{encoder_forward.1} parent=47 // pred_check
        %p1447 = pneg %p233
      $region70: #{encoder_forward.1} parent=47 // pred_check_branch
        %1449 = sbr.rel (%p1447) target = $region72
      $region71: #{encoder_forward.1} parent=47 // pred_region
        _
      $region72: #{encoder_forward.1} parent=47 // pred_fallthru
        _
    $region48: #{encoder_forward.1} parent=5 // pred_fallthru
      _
    %p1450 = scmp.le.s32.totalorder 2, %s16
    // Predicated region
    $region73: #{encoder_forward.1} parent=5 // pred_check
      %p1451 = pneg %p1450
    $region74: #{encoder_forward.1} parent=5 // pred_check_branch
      %1453 = sbr.rel (%p1451) target = $region76
    $region75: #{encoder_forward.1} parent=5 // pred_region
      %s1454 = ssub.s32 %s16, 2
      // Predicated region
      $region77: #{encoder_forward.1} parent=75 // pred_check
        %p1455 = pneg %p197
      $region78: #{encoder_forward.1} parent=75 // pred_check_branch
        %1457 = sbr.rel (%p1455) target = $region80
      $region79: #{encoder_forward.1} parent=75 // pred_region
        %s1458 = smul.u32 4, %s22
        %p1459 = scmp.lt.s32.totalorder %s1458, 7
        %s1460 = scalar_select %p1459, %s1458, 7
        %s1461 = smul.addr %s1460, 8
        %s1462 = scalar_lea.vmem %s7, %s1461
      $region80: #{encoder_forward.1} parent=75 // pred_fallthru
        _
    $region76: #{encoder_forward.1} parent=5 // pred_fallthru
      _
  $region6: #{encoder_forward.1} parent=0 // loop_footer
    %s20 = sadd.s32 1, %s16
  $region7: #{encoder_forward.1} parent=0 // loop_footer_branch
    %15 = sbr.rel target = $region3
  $region8: #{encoder_forward.1} parent=0 // loop_exit
    _

</llo_original>
